<compile_context>
chip_gen: v7x
topology: tpu7x:2x2x1
jax: 0.10.0
libtpu: 0.0.40
codegen_flags: <defaults>
</compile_context>

<pallas_src>
import functools

import jax
import jax.numpy as jnp
import numpy as np
from jax.experimental import pallas as pl
from jax.experimental.pallas import tpu as pltpu

# ---------------- model hyperparameters (module defaults) ----------------
TEXT_DIM = 64          # text_embedding_dim
GRAPH_DIM = 64         # graph_hidden_dim (logical)
STATE_DIM = 128        # state_hidden_dim
NODE_TYPES = 74        # node_types (== node feature dim)
MAX_NODES = 100        # max_nodes
LN_EPS = 1e-5

# ---------------- lane-dense padded widths ----------------
NODE_TYPES_PAD = 128   # node-feature / node-type-logit width
GRAPH_PAD = 128        # padded GCN hidden width
CONN_PAD = 128         # padded connection width
HEAD_PAD = NODE_TYPES_PAD + CONN_PAD   # fused head output width (256)
N_PAD = 128            # STATIC padded node count (>= MAX_NODES, lane-dense)
MXU_DTYPE = jnp.bfloat16               # matmul operand dtype (f32 accumulation)

# ---------------- bias-slab layout (all offsets are 128-lane aligned) ----------------
OFF_GCN_B1 = 0
OFF_GCN_B2 = 128
OFF_LN_GAMMA = 256
OFF_LN_BETA = 384
OFF_GRU0_BI = 512        # 3*STATE_DIM wide
OFF_GRU0_BHN = 896
OFF_GRU1_BI = 1024       # 3*STATE_DIM wide
OFF_GRU1_BHN = 1408
OFF_HEAD_B = 1536        # HEAD_PAD wide
BIAS_SLAB_W = 1792


def _mdot(a, b, dtype=MXU_DTYPE):
    """Matmul with `dtype` operands and f32 accumulation (no-op cast if already bf16)."""
    return jnp.dot(a.astype(dtype), b.astype(dtype),
                   preferred_element_type=jnp.float32)


def _fdot(a, b):
    """f32 matmul with f32 accumulation (adjacency / mean-pool products)."""
    return jnp.dot(a, b, preferred_element_type=jnp.float32)


def _vmem_specs(n):
    return [pl.BlockSpec(memory_space=pltpu.MemorySpace.VMEM) for _ in range(n)]


def _round_up(n, m):
    return ((n + m - 1) // m) * m


# =========================================================================
# Single fused kernel:
#   GCN(2 layers) -> LayerNorm -> mean pool -> 2-layer GRU (1 timestep)
#   -> fused node-type + connection head (one 256-lane matmul)
# PyTorch GRU gate order (r, z, n):
#   r = sigmoid(x W_ir + b_ir + h W_hr + b_hr)
#   z = sigmoid(x W_iz + b_iz + h W_hz + b_hz)
#   n = tanh  (x W_in + b_in + r * (h W_hn + b_hn))
#   h' = (1 - z) * n + z * h
# (b_ir+b_hr and b_iz+b_hz pre-combined on the host; b_in / b_hn kept split.)
# =========================================================================
def fused_decoder_kernel(a_ref, x_ref, pool_ref, text_ref, h0_ref, h1_ref,
                         w1_ref, w2_ref,
                         wih0t_ref, wih0g_ref, whh0_ref,
                         wih1_ref, whh1_ref, whead_ref, bias_ref,
                         head_ref, h0o_ref, h1o_ref):
    H = STATE_DIM

    def bias(off, size):
        return bias_ref[:, off:off + size]                            # (1, size) f32

    # ---- GCN encoder: A @ (X @ W) ordering; weight matmuls bf16, A matmuls f32
    a = a_ref[...]                                                     # (N_PAD, N_PAD) f32
    xw = _mdot(x_ref[...], w1_ref[...])                                # (N_PAD, GRAPH_PAD)
    g = jnp.maximum(_fdot(a, xw) + bias(OFF_GCN_B1, GRAPH_PAD), 0.0)
    gw = _mdot(g, w2_ref[...])
    g = _fdot(a, gw) + bias(OFF_GCN_B2, GRAPH_PAD)

    # LayerNorm over the logical 64-wide feature dim (two-pass, padded cols masked)
    feat_mask = (jax.lax.broadcasted_iota(jnp.int32, (1, GRAPH_PAD), 1)
                 < GRAPH_DIM).astype(jnp.float32)
    mean = jnp.sum(g, axis=-1, keepdims=True) * (1.0 / GRAPH_DIM)
    centered = (g - mean) * feat_mask
    var = jnp.sum(centered * centered, axis=-1, keepdims=True) * (1.0 / GRAPH_DIM)
    g = (centered * jax.lax.rsqrt(var + LN_EPS) * bias(OFF_LN_GAMMA, GRAPH_PAD)
         + bias(OFF_LN_BETA, GRAPH_PAD))

    # global mean pool (f32): padded rows/cols of pool are zero
    graph_enc = _fdot(pool_ref[...], g)                                # (Bp, GRAPH_PAD)

    def gru_cell(gx, h, whh_ref, bhn):
        gh = _mdot(h, whh_ref[...])                                    # (Bp, 3H)
        r = jax.nn.sigmoid(gx[:, 0:H] + gh[:, 0:H])
        z = jax.nn.sigmoid(gx[:, H:2 * H] + gh[:, H:2 * H])
        n = jnp.tanh(gx[:, 2 * H:] + r * (gh[:, 2 * H:] + bhn))
        return (1.0 - z) * n + z * h

    # GRU layer 0: split input matmul replaces concat([text, graph_enc]) @ W_ih
    gx0 = (_mdot(text_ref[...], wih0t_ref[...])
           + _mdot(graph_enc, wih0g_ref[...]) + bias(OFF_GRU0_BI, 3 * H))
    h0n = gru_cell(gx0, h0_ref[...], whh0_ref, bias(OFF_GRU0_BHN, H))
    # inter-layer dropout: eval no-op
    gx1 = _mdot(h0n, wih1_ref[...]) + bias(OFF_GRU1_BI, 3 * H)
    h1n = gru_cell(gx1, h1_ref[...], whh1_ref, bias(OFF_GRU1_BHN, H))

    h0o_ref[...] = h0n
    h1o_ref[...] = h1n

    # Fused node-type + connection head: one lane-dense 256-wide matmul.
    head = _mdot(h1n, whead_ref[...]) + bias(OFF_HEAD_B, HEAD_PAD)
    head_ref[:, 0:NODE_TYPES_PAD] = head[:, 0:NODE_TYPES_PAD]          # raw logits half
    head_ref[:, NODE_TYPES_PAD:HEAD_PAD] = jax.nn.sigmoid(head[:, NODE_TYPES_PAD:HEAD_PAD])


def fused_decoder_step(kparams, a_hat, x_pad, pool, text_pad, h0, h1):
    b_pad = text_pad.shape[0]
    out_shapes = (
        jax.ShapeDtypeStruct((b_pad, HEAD_PAD), jnp.float32),
        jax.ShapeDtypeStruct((b_pad, STATE_DIM), jnp.float32),
        jax.ShapeDtypeStruct((b_pad, STATE_DIM), jnp.float32),
    )
    return pl.pallas_call(
        fused_decoder_kernel,
        out_shape=out_shapes,
        in_specs=_vmem_specs(15),
        out_specs=tuple(_vmem_specs(3)),
        input_output_aliases={4: 1, 5: 2},   # h0 -> h0_out, h1 -> h1_out (in-place state)
    )(a_hat, x_pad, pool, text_pad, h0, h1,
      kparams["gcn_w1"], kparams["gcn_w2"],
      kparams["gru0_w_ih_text"], kparams["gru0_w_ih_graph"], kparams["gru0_w_hh"],
      kparams["gru1_w_ih"], kparams["gru1_w_hh"],
      kparams["head_w"], kparams["bias_slab"])


# =========================================================================
# Plain-JAX glue: normalized adjacency (one-hot matmul, no scatter),
# pooling matrix, parameter init / packing into kernel layout.
# =========================================================================
def build_gcn_norm_adj(edge_index, num_nodes, n_pad):
    """A_hat = D^-1/2 (A + I) D^-1/2 with binary A[dst, src]; duplicate edges and
    explicit self-loops are clipped (diag never becomes 2); padded rows/cols = 0.
    TODO(synk): torch_geometric GCNConv sums duplicate edges; clipping is a
    deliberate simplification for well-formed ASTs (no duplicate edges)."""
    ids = jnp.arange(n_pad, dtype=jnp.int32)
    src = edge_index[0].astype(jnp.int32)
    dst = edge_index[1].astype(jnp.int32)
    dst_oh = (dst[:, None] == ids[None, :]).astype(jnp.float32)        # (E, Np)
    src_oh = (src[:, None] == ids[None, :]).astype(jnp.float32)        # (E, Np)
    a = jnp.dot(dst_oh.T, src_oh, preferred_element_type=jnp.float32)  # A[dst, src] counts
    eye_real = jnp.eye(n_pad, dtype=jnp.float32) * (ids < num_nodes).astype(jnp.float32)[None, :]
    a = jnp.minimum(a + eye_real, 1.0)
    deg = jnp.sum(a, axis=1)
    d_inv_sqrt = jnp.where(deg > 0, jax.lax.rsqrt(deg), 0.0)
    return d_inv_sqrt[:, None] * a * d_inv_sqrt[None, :]


def build_pool_matrix(batch_idx, num_nodes, n_pad, b_pad):
    """P[b, n] = 1/count_b if batch[n] == b else 0 (missing graphs / padding -> zero)."""
    bidx = jnp.full((n_pad,), -1, jnp.int32).at[:num_nodes].set(batch_idx.astype(jnp.int32))
    onehot = (bidx[None, :] == jnp.arange(b_pad, dtype=jnp.int32)[:, None]).astype(jnp.float32)
    counts = jnp.clip(jnp.sum(onehot, axis=1, keepdims=True), 1.0, None)
    return onehot / counts


def init_params(key):
    """Logical (unpadded) parameters, PyTorch-style shapes stored as (in, out)."""
    def uniform(k, shape, fan_in):
        bound = 1.0 / np.sqrt(fan_in)
        return jax.random.uniform(k, shape, jnp.float32, -bound, bound)

    keys = jax.random.split(key, 16)
    in_size = TEXT_DIM + GRAPH_DIM
    return {
        "gcn_w1": uniform(keys[0], (NODE_TYPES, GRAPH_DIM), NODE_TYPES),
        "gcn_b1": uniform(keys[1], (1, GRAPH_DIM), NODE_TYPES),
        "gcn_w2": uniform(keys[2], (GRAPH_DIM, GRAPH_DIM), GRAPH_DIM),
        "gcn_b2": uniform(keys[3], (1, GRAPH_DIM), GRAPH_DIM),
        "ln_gamma": jnp.ones((1, GRAPH_DIM), jnp.float32),
        "ln_beta": jnp.zeros((1, GRAPH_DIM), jnp.float32),
        "gru0_w_ih": uniform(keys[4], (in_size, 3 * STATE_DIM), STATE_DIM),
        "gru0_w_hh": uniform(keys[5], (STATE_DIM, 3 * STATE_DIM), STATE_DIM),
        "gru0_b_ih": uniform(keys[6], (1, 3 * STATE_DIM), STATE_DIM),
        "gru0_b_hh": uniform(keys[7], (1, 3 * STATE_DIM), STATE_DIM),
        "gru1_w_ih": uniform(keys[8], (STATE_DIM, 3 * STATE_DIM), STATE_DIM),
        "gru1_w_hh": uniform(keys[9], (STATE_DIM, 3 * STATE_DIM), STATE_DIM),
        "gru1_b_ih": uniform(keys[10], (1, 3 * STATE_DIM), STATE_DIM),
        "gru1_b_hh": uniform(keys[11], (1, 3 * STATE_DIM), STATE_DIM),
        "node_w": uniform(keys[12], (STATE_DIM, NODE_TYPES), STATE_DIM),
        "node_b": uniform(keys[13], (1, NODE_TYPES), STATE_DIM),
        "conn_w": uniform(keys[14], (STATE_DIM, MAX_NODES), STATE_DIM),
        "conn_b": uniform(keys[15], (1, MAX_NODES), STATE_DIM),
    }


def pack_params(p):
    """Kernel layout: bf16 padded/fused weights + one f32 bias slab (done once, offline)."""
    H = STATE_DIM

    def combine_bias(b_ih, b_hh):
        # r,z biases summed offline; n-gate input bias kept; b_hn separate (r multiplies it)
        b_i = jnp.concatenate([b_ih[:, :2 * H] + b_hh[:, :2 * H], b_ih[:, 2 * H:]], axis=-1)
        return b_i, b_hh[:, 2 * H:]

    b_i0, b_hn0 = combine_bias(p["gru0_b_ih"], p["gru0_b_hh"])
    b_i1, b_hn1 = combine_bias(p["gru1_b_ih"], p["gru1_b_hh"])

    # fused head weight / bias (node-type logits | connection logits), lane-padded
    head_w = jnp.zeros((H, HEAD_PAD), jnp.float32)
    head_w = head_w.at[:, :NODE_TYPES].set(p["node_w"])
    head_w = head_w.at[:, NODE_TYPES_PAD:NODE_TYPES_PAD + MAX_NODES].set(p["conn_w"])
    head_b = jnp.zeros((1, HEAD_PAD), jnp.float32)
    head_b = head_b.at[:, :NODE_TYPES].set(p["node_b"])
    head_b = head_b.at[:, NODE_TYPES_PAD:NODE_TYPES_PAD + MAX_NODES].set(p["conn_b"])

    # single f32 bias/affine slab (all offsets 128-lane aligned)
    slab = jnp.zeros((1, BIAS_SLAB_W), jnp.float32)
    slab = slab.at[:, OFF_GCN_B1:OFF_GCN_B1 + GRAPH_DIM].set(p["gcn_b1"])
    slab = slab.at[:, OFF_GCN_B2:OFF_GCN_B2 + GRAPH_DIM].set(p["gcn_b2"])
    slab = slab.at[:, OFF_LN_GAMMA:OFF_LN_GAMMA + GRAPH_DIM].set(p["ln_gamma"])
    slab = slab.at[:, OFF_LN_BETA:OFF_LN_BETA + GRAPH_DIM].set(p["ln_beta"])
    slab = slab.at[:, OFF_GRU0_BI:OFF_GRU0_BI + 3 * H].set(b_i0)
    slab = slab.at[:, OFF_GRU0_BHN:OFF_GRU0_BHN + H].set(b_hn0)
    slab = slab.at[:, OFF_GRU1_BI:OFF_GRU1_BI + 3 * H].set(b_i1)
    slab = slab.at[:, OFF_GRU1_BHN:OFF_GRU1_BHN + H].set(b_hn1)
    slab = slab.at[:, OFF_HEAD_B:OFF_HEAD_B + HEAD_PAD].set(head_b)

    return {
        # bf16 weights (lane-dense padding with zeros)
        "gcn_w1": jnp.zeros((NODE_TYPES_PAD, GRAPH_PAD), jnp.float32)
                    .at[:NODE_TYPES, :GRAPH_DIM].set(p["gcn_w1"]).astype(MXU_DTYPE),
        "gcn_w2": jnp.zeros((GRAPH_PAD, GRAPH_PAD), jnp.float32)
                    .at[:GRAPH_DIM, :GRAPH_DIM].set(p["gcn_w2"]).astype(MXU_DTYPE),
        "gru0_w_ih_text": p["gru0_w_ih"][:TEXT_DIM].astype(MXU_DTYPE),
        "gru0_w_ih_graph": jnp.zeros((GRAPH_PAD, 3 * H), jnp.float32)
                             .at[:GRAPH_DIM].set(p["gru0_w_ih"][TEXT_DIM:]).astype(MXU_DTYPE),
        "gru0_w_hh": p["gru0_w_hh"].astype(MXU_DTYPE),
        "gru1_w_ih": p["gru1_w_ih"].astype(MXU_DTYPE),
        "gru1_w_hh": p["gru1_w_hh"].astype(MXU_DTYPE),
        "head_w": head_w.astype(MXU_DTYPE),
        # f32 bias slab
        "bias_slab": slab,
    }


def forward(kparams, text_embedding, partial_graph=None, hidden_state=None):
    batch = text_embedding.shape[0]
    b_pad = _round_up(max(batch, 16), 16)     # bf16 packs 16 sublanes per vreg

    if (partial_graph is not None and partial_graph.get("x") is not None
            and partial_graph["x"].shape[0] > 0):
        x = partial_graph["x"].astype(jnp.float32)
        n = x.shape[0]
        # static N_PAD=128: kernel shapes never change as the AST grows
        a_hat = build_gcn_norm_adj(partial_graph["edge_index"], n, N_PAD)
        x_pad = jnp.zeros((N_PAD, NODE_TYPES_PAD), jnp.float32).at[:n, :NODE_TYPES].set(x)
        pool = build_pool_matrix(partial_graph["batch"], n, N_PAD, b_pad)
    else:
        # zero pooling matrix -> graph embedding is exactly zero (matches torch path)
        a_hat = jnp.zeros((N_PAD, N_PAD), jnp.float32)
        x_pad = jnp.zeros((N_PAD, NODE_TYPES_PAD), jnp.float32)
        pool = jnp.zeros((b_pad, N_PAD), jnp.float32)

    text_pad = jnp.zeros((b_pad, TEXT_DIM), jnp.float32).at[:batch].set(
        text_embedding.astype(jnp.float32))

    if hidden_state is None:
        h0 = jnp.zeros((b_pad, STATE_DIM), jnp.float32)
        h1 = jnp.zeros((b_pad, STATE_DIM), jnp.float32)
    else:
        h0 = jnp.zeros((b_pad, STATE_DIM), jnp.float32).at[:batch].set(hidden_state[0])
        h1 = jnp.zeros((b_pad, STATE_DIM), jnp.float32).at[:batch].set(hidden_state[1])

    head, h0n, h1n = fused_decoder_step(kparams, a_hat, x_pad, pool, text_pad, h0, h1)

    return {
        "node_type_logits": head[:batch, :NODE_TYPES],
        "connection_probs": head[:batch, NODE_TYPES_PAD:NODE_TYPES_PAD + MAX_NODES],
        "hidden_state": jnp.stack([h0n[:batch], h1n[:batch]], axis=0),
    }


# =========================================================================
# Pure-JAX reference (logical params) for verification.
# Matches the kernel's precision policy: adjacency / pool matmuls f32,
# weight matmuls in `matmul_dtype` with f32 accumulation.
# =========================================================================
def forward_ref(params, text_embedding, partial_graph=None, hidden_state=None,
                matmul_dtype=jnp.float32):
    wdot = functools.partial(_mdot, dtype=matmul_dtype)
    batch = text_embedding.shape[0]
    if (partial_graph is not None and partial_graph.get("x") is not None
            and partial_graph["x"].shape[0] > 0):
        x = partial_graph["x"].astype(jnp.float32)
        n = x.shape[0]
        a = build_gcn_norm_adj(partial_graph["edge_index"], n, n)
        pool = build_pool_matrix(partial_graph["batch"], n, n, batch)
        h = jnp.maximum(_fdot(a, wdot(x, params["gcn_w1"])) + params["gcn_b1"], 0.0)
        h = _fdot(a, wdot(h, params["gcn_w2"])) + params["gcn_b2"]
        mean = h.mean(-1, keepdims=True)
        var = ((h - mean) ** 2).mean(-1, keepdims=True)
        h = (h - mean) * jax.lax.rsqrt(var + LN_EPS) * params["ln_gamma"] + params["ln_beta"]
        graph_encoded = _fdot(pool, h)
    else:
        graph_encoded = jnp.zeros((batch, GRAPH_DIM), jnp.float32)

    combined = jnp.concatenate([text_embedding.astype(jnp.float32), graph_encoded], axis=-1)
    if hidden_state is None:
        h0 = jnp.zeros((batch, STATE_DIM), jnp.float32)
        h1 = jnp.zeros((batch, STATE_DIM), jnp.float32)
    else:
        h0, h1 = hidden_state[0], hidden_state[1]

    def cell(xx, h, wih, whh, bih, bhh):
        H = STATE_DIM
        gx = wdot(xx, wih) + bih
        gh = wdot(h, whh) + bhh
        r = jax.nn.sigmoid(gx[:, :H] + gh[:, :H])
        z = jax.nn.sigmoid(gx[:, H:2 * H] + gh[:, H:2 * H])
        n = jnp.tanh(gx[:, 2 * H:] + r * gh[:, 2 * H:])
        return (1.0 - z) * n + z * h

    h0n = cell(combined, h0, params["gru0_w_ih"], params["gru0_w_hh"],
               params["gru0_b_ih"], params["gru0_b_hh"])
    h1n = cell(h0n, h1, params["gru1_w_ih"], params["gru1_w_hh"],
               params["gru1_b_ih"], params["gru1_b_hh"])
    logits = wdot(h1n, params["node_w"]) + params["node_b"]
    conn = jax.nn.sigmoid(wdot(h1n, params["conn_w"]) + params["conn_b"])
    return {"node_type_logits": logits, "connection_probs": conn,
            "hidden_state": jnp.stack([h0n, h1n], axis=0)}


# =========================================================================
if __name__ == "__main__":
    key = jax.random.PRNGKey(0)
    k_param, k_text, k_nodes = jax.random.split(key, 3)

    params = init_params(k_param)       # logical params (PyTorch layout)
    kparams = pack_params(params)       # padded / fused / bf16 kernel layout

    batch_size = 4
    text_embedding = jax.random.normal(k_text, (batch_size, TEXT_DIM), jnp.float32)

    # small partial AST: 10 nodes split across the 4 graphs, chain edges inside each graph
    num_nodes = 10
    node_feats = jax.random.normal(k_nodes, (num_nodes, NODE_TYPES), jnp.float32)
    groups = [[0, 1, 2], [3, 4, 5], [6, 7], [8, 9]]
    edges = []
    for g in groups:
        for i in range(len(g) - 1):
            edges.append((g[i], g[i + 1]))
            edges.append((g[i + 1], g[i]))
    edge_index = jnp.asarray(np.array(edges, dtype=np.int32).T)          # (2, E)
    batch_idx = jnp.asarray(np.array([0, 0, 0, 1, 1, 1, 2, 2, 3, 3], dtype=np.int32))
    partial_graph = {"x": node_feats, "edge_index": edge_index, "batch": batch_idx}

    fwd = jax.jit(forward)

    out1 = fwd(kparams, text_embedding, partial_graph=partial_graph, hidden_state=None)
    out2 = fwd(kparams, text_embedding, partial_graph=partial_graph,
               hidden_state=out1["hidden_state"])                        # exercises hidden path
    out3 = fwd(kparams, text_embedding, partial_graph=None, hidden_state=None)
    jax.block_until_ready((out1, out2, out3))

    def assert_close(out, ref, tol):
        for k in ("node_type_logits", "connection_probs", "hidden_state"):
            np.testing.assert_allclose(np.asarray(out[k]), np.asarray(ref[k]),
                                       rtol=tol, atol=tol)

    # precision-matched references (same bf16-weight-matmul / f32-A-pool policy)
    ref1 = forward_ref(params, text_embedding, partial_graph, None, matmul_dtype=MXU_DTYPE)
    ref2 = forward_ref(params, text_embedding, partial_graph, out1["hidden_state"],
                       matmul_dtype=MXU_DTYPE)
    ref3 = forward_ref(params, text_embedding, None, None, matmul_dtype=MXU_DTYPE)
    assert_close(out1, ref1, 5e-3)
    assert_close(out2, ref2, 5e-3)
    assert_close(out3, ref3, 5e-3)

    # sanity vs a pure-f32 reference: bounds the bf16 mixed-precision error
    ref1_f32 = forward_ref(params, text_embedding, partial_graph, None,
                           matmul_dtype=jnp.float32)
    assert_close(out1, ref1_f32, 5e-2)

    assert out1["node_type_logits"].shape == (batch_size, NODE_TYPES)
    assert out1["connection_probs"].shape == (batch_size, MAX_NODES)
    assert out1["hidden_state"].shape == (2, batch_size, STATE_DIM)

    print("KERNEL_OK")
</pallas_src>

<mosaic_0001>
module attributes {stable_mosaic.version = 11 : i64} {
  func.func @fused_decoder_kernel(%arg0: memref<128x128xf32, #tpu.memory_space<vmem>>, %arg1: memref<128x128xf32, #tpu.memory_space<vmem>>, %arg2: memref<16x128xf32, #tpu.memory_space<vmem>>, %arg3: memref<16x64xf32, #tpu.memory_space<vmem>>, %arg4: memref<16x128xf32, #tpu.memory_space<vmem>>, %arg5: memref<16x128xf32, #tpu.memory_space<vmem>>, %arg6: memref<128x128xbf16, #tpu.memory_space<vmem>>, %arg7: memref<128x128xbf16, #tpu.memory_space<vmem>>, %arg8: memref<64x384xbf16, #tpu.memory_space<vmem>>, %arg9: memref<128x384xbf16, #tpu.memory_space<vmem>>, %arg10: memref<128x384xbf16, #tpu.memory_space<vmem>>, %arg11: memref<128x384xbf16, #tpu.memory_space<vmem>>, %arg12: memref<128x384xbf16, #tpu.memory_space<vmem>>, %arg13: memref<128x256xbf16, #tpu.memory_space<vmem>>, %arg14: memref<1x1792xf32, #tpu.memory_space<vmem>>, %arg15: memref<16x256xf32, #tpu.memory_space<vmem>>, %arg16: memref<16x128xf32, #tpu.memory_space<vmem>>, %arg17: memref<16x128xf32, #tpu.memory_space<vmem>>) attributes {dimension_semantics = [], scalar_prefetch = 0 : i64, scratch_operands = 0 : i64, tpu.core_type = #tpu.core_type<tc>} {
    %c0 = arith.constant 0 : index
    %c0_0 = arith.constant 0 : index
    %0 = vector.load %arg0[%c0, %c0_0] : memref<128x128xf32, #tpu.memory_space<vmem>>, vector<128x128xf32>
    %c0_1 = arith.constant 0 : index
    %c0_2 = arith.constant 0 : index
    %1 = vector.load %arg1[%c0_1, %c0_2] : memref<128x128xf32, #tpu.memory_space<vmem>>, vector<128x128xf32>
    %c0_3 = arith.constant 0 : index
    %c0_4 = arith.constant 0 : index
    %2 = vector.load %arg6[%c0_3, %c0_4] : memref<128x128xbf16, #tpu.memory_space<vmem>>, vector<128x128xbf16>
    %3 = arith.truncf %1 : vector<128x128xf32> to vector<128x128xbf16>
    %cst = arith.constant dense<0.000000e+00> : vector<128x128xf32>
    %4 = tpu.matmul %3, %2, %cst {dimension_numbers = #tpu.dot_dimension_numbers<[1], [0], [0], [1], [0, 0, 1, 1], [], []>} : vector<128x128xbf16>, vector<128x128xbf16>, vector<128x128xf32> -> vector<128x128xf32>
    %cst_5 = arith.constant dense<0.000000e+00> : vector<128x128xf32>
    %5 = tpu.matmul %0, %4, %cst_5 {dimension_numbers = #tpu.dot_dimension_numbers<[1], [0], [0], [1], [0, 0, 1, 1], [], []>} : vector<128x128xf32>, vector<128x128xf32>, vector<128x128xf32> -> vector<128x128xf32>
    %c0_6 = arith.constant 0 : index
    %c0_7 = arith.constant 0 : index
    %6 = vector.load %arg14[%c0_6, %c0_7] : memref<1x1792xf32, #tpu.memory_space<vmem>>, vector<1x128xf32>
    %7 = vector.broadcast %6 : vector<1x128xf32> to vector<128x128xf32>
    %8 = arith.addf %5, %7 : vector<128x128xf32>
    %cst_8 = arith.constant 0.000000e+00 : f32
    %9 = vector.broadcast %cst_8 : f32 to vector<128x128xf32>
    %10 = arith.maximumf %8, %9 : vector<128x128xf32>
    %c0_9 = arith.constant 0 : index
    %c0_10 = arith.constant 0 : index
    %11 = vector.load %arg7[%c0_9, %c0_10] : memref<128x128xbf16, #tpu.memory_space<vmem>>, vector<128x128xbf16>
    %12 = arith.truncf %10 : vector<128x128xf32> to vector<128x128xbf16>
    %cst_11 = arith.constant dense<0.000000e+00> : vector<128x128xf32>
    %13 = tpu.matmul %12, %11, %cst_11 {dimension_numbers = #tpu.dot_dimension_numbers<[1], [0], [0], [1], [0, 0, 1, 1], [], []>} : vector<128x128xbf16>, vector<128x128xbf16>, vector<128x128xf32> -> vector<128x128xf32>
    %cst_12 = arith.constant dense<0.000000e+00> : vector<128x128xf32>
    %14 = tpu.matmul %0, %13, %cst_12 {dimension_numbers = #tpu.dot_dimension_numbers<[1], [0], [0], [1], [0, 0, 1, 1], [], []>} : vector<128x128xf32>, vector<128x128xf32>, vector<128x128xf32> -> vector<128x128xf32>
    %c0_13 = arith.constant 0 : index
    %c128 = arith.constant 128 : index
    %15 = vector.load %arg14[%c0_13, %c128] : memref<1x1792xf32, #tpu.memory_space<vmem>>, vector<1x128xf32>
    %16 = vector.broadcast %15 : vector<1x128xf32> to vector<128x128xf32>
    %17 = arith.addf %14, %16 : vector<128x128xf32>
    %18 = tpu.iota {dimensions = array<i32: 1>} : vector<1x128xi32>
    %c64_i32 = arith.constant 64 : i32
    %19 = vector.broadcast %c64_i32 : i32 to vector<1x128xi32>
    %20 = arith.cmpi slt, %18, %19 : vector<1x128xi32>
    %21 = arith.extui %20 : vector<1x128xi1> to vector<1x128xi32>
    %22 = arith.sitofp %21 : vector<1x128xi32> to vector<1x128xf32>
    %cst_14 = arith.constant dense<0.000000e+00> : vector<128xf32>
    %23 = vector.multi_reduction <add>, %17, %cst_14 [1] : vector<128x128xf32> to vector<128xf32>
    %24 = vector.shape_cast %23 : vector<128xf32> to vector<128x1xf32>
    %cst_15 = arith.constant 1.562500e-02 : f32
    %25 = vector.broadcast %cst_15 : f32 to vector<128x1xf32>
    %26 = arith.mulf %24, %25 : vector<128x1xf32>
    %27 = vector.broadcast %26 : vector<128x1xf32> to vector<128x128xf32>
    %28 = arith.subf %17, %27 : vector<128x128xf32>
    %29 = vector.broadcast %22 : vector<1x128xf32> to vector<128x128xf32>
    %30 = arith.mulf %28, %29 : vector<128x128xf32>
    %31 = arith.mulf %30, %30 : vector<128x128xf32>
    %cst_16 = arith.constant dense<0.000000e+00> : vector<128xf32>
    %32 = vector.multi_reduction <add>, %31, %cst_16 [1] : vector<128x128xf32> to vector<128xf32>
    %33 = vector.shape_cast %32 : vector<128xf32> to vector<128x1xf32>
    %cst_17 = arith.constant 1.562500e-02 : f32
    %34 = vector.broadcast %cst_17 : f32 to vector<128x1xf32>
    %35 = arith.mulf %33, %34 : vector<128x1xf32>
    %cst_18 = arith.constant 9.99999974E-6 : f32
    %36 = vector.broadcast %cst_18 : f32 to vector<128x1xf32>
    %37 = arith.addf %35, %36 : vector<128x1xf32>
    %38 = math.rsqrt %37 : vector<128x1xf32>
    %39 = vector.broadcast %38 : vector<128x1xf32> to vector<128x128xf32>
    %40 = arith.mulf %30, %39 : vector<128x128xf32>
    %c0_19 = arith.constant 0 : index
    %c256 = arith.constant 256 : index
    %41 = vector.load %arg14[%c0_19, %c256] : memref<1x1792xf32, #tpu.memory_space<vmem>>, vector<1x128xf32>
    %42 = vector.broadcast %41 : vector<1x128xf32> to vector<128x128xf32>
    %43 = arith.mulf %40, %42 : vector<128x128xf32>
    %c0_20 = arith.constant 0 : index
    %c384 = arith.constant 384 : index
    %44 = vector.load %arg14[%c0_20, %c384] : memref<1x1792xf32, #tpu.memory_space<vmem>>, vector<1x128xf32>
    %45 = vector.broadcast %44 : vector<1x128xf32> to vector<128x128xf32>
    %46 = arith.addf %43, %45 : vector<128x128xf32>
    %c0_21 = arith.constant 0 : index
    %c0_22 = arith.constant 0 : index
    %47 = vector.load %arg2[%c0_21, %c0_22] : memref<16x128xf32, #tpu.memory_space<vmem>>, vector<16x128xf32>
    %cst_23 = arith.constant dense<0.000000e+00> : vector<16x128xf32>
    %48 = tpu.matmul %47, %46, %cst_23 {dimension_numbers = #tpu.dot_dimension_numbers<[1], [0], [0], [1], [0, 0, 1, 1], [], []>} : vector<16x128xf32>, vector<128x128xf32>, vector<16x128xf32> -> vector<16x128xf32>
    %c0_24 = arith.constant 0 : index
    %c0_25 = arith.constant 0 : index
    %49 = vector.load %arg3[%c0_24, %c0_25] : memref<16x64xf32, #tpu.memory_space<vmem>>, vector<16x64xf32>
    %c0_26 = arith.constant 0 : index
    %c0_27 = arith.constant 0 : index
    %50 = vector.load %arg8[%c0_26, %c0_27] : memref<64x384xbf16, #tpu.memory_space<vmem>>, vector<64x384xbf16>
    %51 = arith.truncf %49 : vector<16x64xf32> to vector<16x64xbf16>
    %cst_28 = arith.constant dense<0.000000e+00> : vector<16x384xf32>
    %52 = tpu.matmul %51, %50, %cst_28 {dimension_numbers = #tpu.dot_dimension_numbers<[1], [0], [0], [1], [0, 0, 1, 1], [], []>} : vector<16x64xbf16>, vector<64x384xbf16>, vector<16x384xf32> -> vector<16x384xf32>
    %c0_29 = arith.constant 0 : index
    %c0_30 = arith.constant 0 : index
    %53 = vector.load %arg9[%c0_29, %c0_30] : memref<128x384xbf16, #tpu.memory_space<vmem>>, vector<128x384xbf16>
    %54 = arith.truncf %48 : vector<16x128xf32> to vector<16x128xbf16>
    %cst_31 = arith.constant dense<0.000000e+00> : vector<16x384xf32>
    %55 = tpu.matmul %54, %53, %cst_31 {dimension_numbers = #tpu.dot_dimension_numbers<[1], [0], [0], [1], [0, 0, 1, 1], [], []>} : vector<16x128xbf16>, vector<128x384xbf16>, vector<16x384xf32> -> vector<16x384xf32>
    %56 = arith.addf %52, %55 : vector<16x384xf32>
    %c0_32 = arith.constant 0 : index
    %c512 = arith.constant 512 : index
    %57 = vector.load %arg14[%c0_32, %c512] : memref<1x1792xf32, #tpu.memory_space<vmem>>, vector<1x384xf32>
    %58 = vector.broadcast %57 : vector<1x384xf32> to vector<16x384xf32>
    %59 = arith.addf %56, %58 : vector<16x384xf32>
    %c0_33 = arith.constant 0 : index
    %c0_34 = arith.constant 0 : index
    %60 = vector.load %arg4[%c0_33, %c0_34] : memref<16x128xf32, #tpu.memory_space<vmem>>, vector<16x128xf32>
    %c0_35 = arith.constant 0 : index
    %c896 = arith.constant 896 : index
    %61 = vector.load %arg14[%c0_35, %c896] : memref<1x1792xf32, #tpu.memory_space<vmem>>, vector<1x128xf32>
    %c0_36 = arith.constant 0 : index
    %c0_37 = arith.constant 0 : index
    %62 = vector.load %arg10[%c0_36, %c0_37] : memref<128x384xbf16, #tpu.memory_space<vmem>>, vector<128x384xbf16>
    %63 = arith.truncf %60 : vector<16x128xf32> to vector<16x128xbf16>
    %cst_38 = arith.constant dense<0.000000e+00> : vector<16x384xf32>
    %64 = tpu.matmul %63, %62, %cst_38 {dimension_numbers = #tpu.dot_dimension_numbers<[1], [0], [0], [1], [0, 0, 1, 1], [], []>} : vector<16x128xbf16>, vector<128x384xbf16>, vector<16x384xf32> -> vector<16x384xf32>
    %65 = vector.extract_strided_slice %59 {offsets = [0, 0], sizes = [16, 128], strides = [1, 1]} : vector<16x384xf32> to vector<16x128xf32>
    %66 = vector.extract_strided_slice %64 {offsets = [0, 0], sizes = [16, 128], strides = [1, 1]} : vector<16x384xf32> to vector<16x128xf32>
    %67 = arith.addf %65, %66 : vector<16x128xf32>
    %68 = arith.negf %67 : vector<16x128xf32>
    %69 = math.exp %68 : vector<16x128xf32>
    %cst_39 = arith.constant 1.000000e+00 : f32
    %70 = vector.broadcast %cst_39 : f32 to vector<16x128xf32>
    %71 = arith.addf %70, %69 : vector<16x128xf32>
    %72 = arith.divf %70, %71 : vector<16x128xf32>
    %73 = vector.extract_strided_slice %59 {offsets = [0, 128], sizes = [16, 128], strides = [1, 1]} : vector<16x384xf32> to vector<16x128xf32>
    %74 = vector.extract_strided_slice %64 {offsets = [0, 128], sizes = [16, 128], strides = [1, 1]} : vector<16x384xf32> to vector<16x128xf32>
    %75 = arith.addf %73, %74 : vector<16x128xf32>
    %76 = arith.negf %75 : vector<16x128xf32>
    %77 = math.exp %76 : vector<16x128xf32>
    %cst_40 = arith.constant 1.000000e+00 : f32
    %78 = vector.broadcast %cst_40 : f32 to vector<16x128xf32>
    %79 = arith.addf %78, %77 : vector<16x128xf32>
    %80 = arith.divf %78, %79 : vector<16x128xf32>
    %81 = vector.extract_strided_slice %59 {offsets = [0, 256], sizes = [16, 128], strides = [1, 1]} : vector<16x384xf32> to vector<16x128xf32>
    %82 = vector.extract_strided_slice %64 {offsets = [0, 256], sizes = [16, 128], strides = [1, 1]} : vector<16x384xf32> to vector<16x128xf32>
    %83 = vector.broadcast %61 : vector<1x128xf32> to vector<16x128xf32>
    %84 = arith.addf %82, %83 : vector<16x128xf32>
    %85 = arith.mulf %72, %84 : vector<16x128xf32>
    %86 = arith.addf %81, %85 : vector<16x128xf32>
    %87 = math.tanh %86 : vector<16x128xf32>
    %cst_41 = arith.constant 1.000000e+00 : f32
    %88 = vector.broadcast %cst_41 : f32 to vector<16x128xf32>
    %89 = arith.subf %88, %80 : vector<16x128xf32>
    %90 = arith.mulf %89, %87 : vector<16x128xf32>
    %91 = arith.mulf %80, %60 : vector<16x128xf32>
    %92 = arith.addf %90, %91 : vector<16x128xf32>
    %c0_42 = arith.constant 0 : index
    %c0_43 = arith.constant 0 : index
    %93 = vector.load %arg11[%c0_42, %c0_43] : memref<128x384xbf16, #tpu.memory_space<vmem>>, vector<128x384xbf16>
    %94 = arith.truncf %92 : vector<16x128xf32> to vector<16x128xbf16>
    %cst_44 = arith.constant dense<0.000000e+00> : vector<16x384xf32>
    %95 = tpu.matmul %94, %93, %cst_44 {dimension_numbers = #tpu.dot_dimension_numbers<[1], [0], [0], [1], [0, 0, 1, 1], [], []>} : vector<16x128xbf16>, vector<128x384xbf16>, vector<16x384xf32> -> vector<16x384xf32>
    %c0_45 = arith.constant 0 : index
    %c1024 = arith.constant 1024 : index
    %96 = vector.load %arg14[%c0_45, %c1024] : memref<1x1792xf32, #tpu.memory_space<vmem>>, vector<1x384xf32>
    %97 = vector.broadcast %96 : vector<1x384xf32> to vector<16x384xf32>
    %98 = arith.addf %95, %97 : vector<16x384xf32>
    %c0_46 = arith.constant 0 : index
    %c0_47 = arith.constant 0 : index
    %99 = vector.load %arg5[%c0_46, %c0_47] : memref<16x128xf32, #tpu.memory_space<vmem>>, vector<16x128xf32>
    %c0_48 = arith.constant 0 : index
    %c1408 = arith.constant 1408 : index
    %100 = vector.load %arg14[%c0_48, %c1408] : memref<1x1792xf32, #tpu.memory_space<vmem>>, vector<1x128xf32>
    %c0_49 = arith.constant 0 : index
    %c0_50 = arith.constant 0 : index
    %101 = vector.load %arg12[%c0_49, %c0_50] : memref<128x384xbf16, #tpu.memory_space<vmem>>, vector<128x384xbf16>
    %102 = arith.truncf %99 : vector<16x128xf32> to vector<16x128xbf16>
    %cst_51 = arith.constant dense<0.000000e+00> : vector<16x384xf32>
    %103 = tpu.matmul %102, %101, %cst_51 {dimension_numbers = #tpu.dot_dimension_numbers<[1], [0], [0], [1], [0, 0, 1, 1], [], []>} : vector<16x128xbf16>, vector<128x384xbf16>, vector<16x384xf32> -> vector<16x384xf32>
    %104 = vector.extract_strided_slice %98 {offsets = [0, 0], sizes = [16, 128], strides = [1, 1]} : vector<16x384xf32> to vector<16x128xf32>
    %105 = vector.extract_strided_slice %103 {offsets = [0, 0], sizes = [16, 128], strides = [1, 1]} : vector<16x384xf32> to vector<16x128xf32>
    %106 = arith.addf %104, %105 : vector<16x128xf32>
    %107 = arith.negf %106 : vector<16x128xf32>
    %108 = math.exp %107 : vector<16x128xf32>
    %cst_52 = arith.constant 1.000000e+00 : f32
    %109 = vector.broadcast %cst_52 : f32 to vector<16x128xf32>
    %110 = arith.addf %109, %108 : vector<16x128xf32>
    %111 = arith.divf %109, %110 : vector<16x128xf32>
    %112 = vector.extract_strided_slice %98 {offsets = [0, 128], sizes = [16, 128], strides = [1, 1]} : vector<16x384xf32> to vector<16x128xf32>
    %113 = vector.extract_strided_slice %103 {offsets = [0, 128], sizes = [16, 128], strides = [1, 1]} : vector<16x384xf32> to vector<16x128xf32>
    %114 = arith.addf %112, %113 : vector<16x128xf32>
    %115 = arith.negf %114 : vector<16x128xf32>
    %116 = math.exp %115 : vector<16x128xf32>
    %cst_53 = arith.constant 1.000000e+00 : f32
    %117 = vector.broadcast %cst_53 : f32 to vector<16x128xf32>
    %118 = arith.addf %117, %116 : vector<16x128xf32>
    %119 = arith.divf %117, %118 : vector<16x128xf32>
    %120 = vector.extract_strided_slice %98 {offsets = [0, 256], sizes = [16, 128], strides = [1, 1]} : vector<16x384xf32> to vector<16x128xf32>
    %121 = vector.extract_strided_slice %103 {offsets = [0, 256], sizes = [16, 128], strides = [1, 1]} : vector<16x384xf32> to vector<16x128xf32>
    %122 = vector.broadcast %100 : vector<1x128xf32> to vector<16x128xf32>
    %123 = arith.addf %121, %122 : vector<16x128xf32>
    %124 = arith.mulf %111, %123 : vector<16x128xf32>
    %125 = arith.addf %120, %124 : vector<16x128xf32>
    %126 = math.tanh %125 : vector<16x128xf32>
    %cst_54 = arith.constant 1.000000e+00 : f32
    %127 = vector.broadcast %cst_54 : f32 to vector<16x128xf32>
    %128 = arith.subf %127, %119 : vector<16x128xf32>
    %129 = arith.mulf %128, %126 : vector<16x128xf32>
    %130 = arith.mulf %119, %99 : vector<16x128xf32>
    %131 = arith.addf %129, %130 : vector<16x128xf32>
    %c0_55 = arith.constant 0 : index
    %c0_56 = arith.constant 0 : index
    %132 = vector.load %arg16[%c0_55, %c0_56] : memref<16x128xf32, #tpu.memory_space<vmem>>, vector<16x128xf32>
    tpu.vector_store %arg16[%c0_55, %c0_56], %92 {strides = array<i32>} : memref<16x128xf32, #tpu.memory_space<vmem>>, vector<16x128xf32>,
    %c0_57 = arith.constant 0 : index
    %c0_58 = arith.constant 0 : index
    %133 = vector.load %arg17[%c0_57, %c0_58] : memref<16x128xf32, #tpu.memory_space<vmem>>, vector<16x128xf32>
    tpu.vector_store %arg17[%c0_57, %c0_58], %131 {strides = array<i32>} : memref<16x128xf32, #tpu.memory_space<vmem>>, vector<16x128xf32>,
    %c0_59 = arith.constant 0 : index
    %c0_60 = arith.constant 0 : index
    %134 = vector.load %arg13[%c0_59, %c0_60] : memref<128x256xbf16, #tpu.memory_space<vmem>>, vector<128x256xbf16>
    %135 = arith.truncf %131 : vector<16x128xf32> to vector<16x128xbf16>
    %cst_61 = arith.constant dense<0.000000e+00> : vector<16x256xf32>
    %136 = tpu.matmul %135, %134, %cst_61 {dimension_numbers = #tpu.dot_dimension_numbers<[1], [0], [0], [1], [0, 0, 1, 1], [], []>} : vector<16x128xbf16>, vector<128x256xbf16>, vector<16x256xf32> -> vector<16x256xf32>
    %c0_62 = arith.constant 0 : index
    %c1536 = arith.constant 1536 : index
    %137 = vector.load %arg14[%c0_62, %c1536] : memref<1x1792xf32, #tpu.memory_space<vmem>>, vector<1x256xf32>
    %138 = vector.broadcast %137 : vector<1x256xf32> to vector<16x256xf32>
    %139 = arith.addf %136, %138 : vector<16x256xf32>
    %140 = vector.extract_strided_slice %139 {offsets = [0, 0], sizes = [16, 128], strides = [1, 1]} : vector<16x256xf32> to vector<16x128xf32>
    %c0_63 = arith.constant 0 : index
    %c0_64 = arith.constant 0 : index
    %141 = vector.load %arg15[%c0_63, %c0_64] : memref<16x256xf32, #tpu.memory_space<vmem>>, vector<16x128xf32>
    tpu.vector_store %arg15[%c0_63, %c0_64], %140 {strides = array<i32>} : memref<16x256xf32, #tpu.memory_space<vmem>>, vector<16x128xf32>,
    %142 = vector.extract_strided_slice %139 {offsets = [0, 128], sizes = [16, 128], strides = [1, 1]} : vector<16x256xf32> to vector<16x128xf32>
    %143 = arith.negf %142 : vector<16x128xf32>
    %144 = math.exp %143 : vector<16x128xf32>
    %cst_65 = arith.constant 1.000000e+00 : f32
    %145 = vector.broadcast %cst_65 : f32 to vector<16x128xf32>
    %146 = arith.addf %145, %144 : vector<16x128xf32>
    %147 = arith.divf %145, %146 : vector<16x128xf32>
    %c0_66 = arith.constant 0 : index
    %c128_67 = arith.constant 128 : index
    %148 = vector.load %arg15[%c0_66, %c128_67] : memref<16x256xf32, #tpu.memory_space<vmem>>, vector<16x128xf32>
    tpu.vector_store %arg15[%c0_66, %c128_67], %147 {strides = array<i32>} : memref<16x256xf32, #tpu.memory_space<vmem>>, vector<16x128xf32>,
    return
  }
}

</mosaic_0001>

<llo_original>
// kernel: forward.1
$region0: #{forward.1}
  #allocation0 [shape = 'u32[]', space=smem, size = 0x4, offset = 0x4, fixed_abs, tag = 'smem constant byte address 0x4 - core index']
  #allocation1 [shape = 'u32[144,128]{1,0:T(1,128)}', space=vmem, size = 0x12000, scoped, tag = 'internal scratch']
  %s0 = inlined_call_operand.vmem [shape: f32[128,128], index: 0, kind: input, shape index: {}]
  %s1 = inlined_call_operand.vmem [shape: f32[128,128], index: 1, kind: input, shape index: {}]
  %s2 = inlined_call_operand.vmem [shape: f32[16,128], index: 2, kind: input, shape index: {}]
  %s3 = inlined_call_operand.vmem [shape: f32[16,64], index: 3, kind: input, shape index: {}]
  %s4 = inlined_call_operand.vmem [shape: f32[16,128], index: 4, kind: input, shape index: {}, may-alias: {4,16}]
  %s5 = inlined_call_operand.vmem [shape: f32[16,128], index: 5, kind: input, shape index: {}, may-alias: {5,17}]
  %s6 = inlined_call_operand.hbm [shape: bf16[128,128], index: 6, kind: input, shape index: {}]
  %s7 = inlined_call_operand.hbm [shape: bf16[128,128], index: 7, kind: input, shape index: {}]
  %s8 = inlined_call_operand.hbm [shape: bf16[64,384], index: 8, kind: input, shape index: {}]
  %s9 = inlined_call_operand.vmem [shape: bf16[128,384], index: 9, kind: input, shape index: {}]
  %s10 = inlined_call_operand.vmem [shape: bf16[128,384], index: 10, kind: input, shape index: {}]
  %s11 = inlined_call_operand.vmem [shape: bf16[128,384], index: 11, kind: input, shape index: {}]
  %s12 = inlined_call_operand.vmem [shape: bf16[128,384], index: 12, kind: input, shape index: {}]
  %s13 = inlined_call_operand.hbm [shape: bf16[128,256], index: 13, kind: input, shape index: {}]
  %s14 = inlined_call_operand.hbm [shape: f32[1,1792], index: 14, kind: input, shape index: {}]
  %s15 = inlined_call_operand.vmem [shape: f32[16,256], index: 15, kind: output, shape index: {0}]
  %s16 = inlined_call_operand.vmem [shape: f32[16,128], index: 16, kind: output, shape index: {1}, may-alias: {4,16}]
  %s17 = inlined_call_operand.vmem [shape: f32[16,128], index: 17, kind: output, shape index: {2}, may-alias: {5,17}]
  %18 = xla_tuple %s15, %s16, %s17
  %s19 = sld [smem:[#allocation0]]
  $region106: #{forward.1} parent=0
    _
  %s21 = ssub.s32 1, %s19
  %s22 = scalar_select 0, %s21, %s19
  $region1: #{forward.1} parent=0
    #allocation2 [shape = 'u8[32768]{0}', space=vmem, size = 0x8000, scoped, tag = 'input window, operand 6, single buffered']
    #allocation3 [shape = 's32[1]{0}', space=sflag, size = 0x4, scoped, tag = 'scoped memory for forward.1']
    #allocation4 [shape = 'u8[32768]{0}', space=vmem, size = 0x8000, scoped, tag = 'input window, operand 7, single buffered']
    #allocation5 [shape = 's32[1]{0}', space=sflag, size = 0x4, scoped, tag = 'scoped memory for forward.1']
    #allocation6 [shape = 'u8[49152]{0}', space=vmem, size = 0xc000, scoped, tag = 'input window, operand 8, single buffered']
    #allocation7 [shape = 'u8[65536]{0}', space=vmem, size = 0x10000, scoped, tag = 'input window, operand 13, single buffered']
    #allocation8 [shape = 's32[1]{0}', space=sflag, size = 0x4, scoped, tag = 'scoped memory for forward.1']
    #allocation9 [shape = 'u8[7168]{0}', space=vmem, size = 0x1c00, scoped, tag = 'input window, operand 14, single buffered']
    %23 = vsyncpa [#allocation3], 0
    %24 = vsyncpa [#allocation5], 0
    %25 = vsyncpa [#allocation8], 0
    // Predicated region
    $region2: #{forward.1} parent=1 // pred_check
      _
    $region3: #{forward.1} parent=1 // pred_check_branch
      %27 = sbr.rel (0) target = $region5
    $region4: #{forward.1} parent=1 // pred_region
      _
    $region5: #{forward.1} parent=1 // pred_fallthru
      _
    // Predicated region
    $region6: #{forward.1} parent=1 // pred_check
      _
    $region7: #{forward.1} parent=1 // pred_check_branch
      %29 = sbr.rel (0) target = $region9
    $region8: #{forward.1} parent=1 // pred_region
      _
    $region9: #{forward.1} parent=1 // pred_fallthru
      _
    // Predicated region
    $region10: #{forward.1} parent=1 // pred_check
      _
    $region11: #{forward.1} parent=1 // pred_check_branch
      %31 = sbr.rel (0) target = $region13
    $region12: #{forward.1} parent=1 // pred_region
      _
    $region13: #{forward.1} parent=1 // pred_fallthru
      _
    // Predicated region
    $region14: #{forward.1} parent=1 // pred_check
      _
    $region15: #{forward.1} parent=1 // pred_check_branch
      %33 = sbr.rel (0) target = $region17
    $region16: #{forward.1} parent=1 // pred_region
      _
    $region17: #{forward.1} parent=1 // pred_fallthru
      _
    // Predicated region
    $region18: #{forward.1} parent=1 // pred_check
      _
    $region19: #{forward.1} parent=1 // pred_check_branch
      %35 = sbr.rel (0) target = $region21
    $region20: #{forward.1} parent=1 // pred_region
      _
    $region21: #{forward.1} parent=1 // pred_fallthru
      _
    // Predicated region
    $region22: #{forward.1} parent=1 // pred_check
      _
    $region23: #{forward.1} parent=1 // pred_check_branch
      %37 = sbr.rel (0) target = $region25
    $region24: #{forward.1} parent=1 // pred_region
      _
    $region25: #{forward.1} parent=1 // pred_fallthru
      _
    // Predicated region
    $region26: #{forward.1} parent=1 // pred_check
      _
    $region27: #{forward.1} parent=1 // pred_check_branch
      %39 = sbr.rel (0) target = $region29
    $region28: #{forward.1} parent=1 // pred_region
      %s41 = ssub.s32 1024, 1024
      %42 = vsyncadd [#allocation3], %s41
      %s43 = sshll.u32 [#allocation2], 4
      %s44 = int_to_ptr.vmem [resolvable:$true] %s43
      %49 = dma.hbm_to_vmem [thread:$0]  %s6, 1024, %s44, [#allocation3], 64, 64, 4
    $region29: #{forward.1} parent=1 // pred_fallthru
      _
    // Predicated region
    $region30: #{forward.1} parent=1 // pred_check
      _
    $region31: #{forward.1} parent=1 // pred_check_branch
      %51 = sbr.rel (0) target = $region33
    $region32: #{forward.1} parent=1 // pred_region
      %s53 = ssub.s32 1024, 1024
      %54 = vsyncadd [#allocation5], %s53
      %s55 = sshll.u32 [#allocation4], 4
      %s56 = int_to_ptr.vmem [resolvable:$true] %s55
      %61 = dma.hbm_to_vmem [thread:$0]  %s7, 1024, %s56, [#allocation5], 64, 64, 4
    $region33: #{forward.1} parent=1 // pred_fallthru
      _
    // Predicated region
    $region34: #{forward.1} parent=1 // pred_check
      _
    $region35: #{forward.1} parent=1 // pred_check_branch
      %63 = sbr.rel (0) target = $region37
    $region36: #{forward.1} parent=1 // pred_region
      %s65 = ssub.s32 1536, 1536
      %66 = vsyncadd [#allocation5], %s65
      %s67 = sshll.u32 [#allocation6], 4
      %s68 = int_to_ptr.vmem [resolvable:$true] %s67
      %73 = dma.hbm_to_vmem [thread:$0]  %s8, 1536, %s68, [#allocation5], 192, 192, 12
    $region37: #{forward.1} parent=1 // pred_fallthru
      _
    // Predicated region
    $region38: #{forward.1} parent=1 // pred_check
      _
    $region39: #{forward.1} parent=1 // pred_check_branch
      %75 = sbr.rel (0) target = $region41
    $region40: #{forward.1} parent=1 // pred_region
      _
    $region41: #{forward.1} parent=1 // pred_fallthru
      _
    // Predicated region
    $region42: #{forward.1} parent=1 // pred_check
      _
    $region43: #{forward.1} parent=1 // pred_check_branch
      %77 = sbr.rel (0) target = $region45
    $region44: #{forward.1} parent=1 // pred_region
      _
    $region45: #{forward.1} parent=1 // pred_fallthru
      _
    // Predicated region
    $region46: #{forward.1} parent=1 // pred_check
      _
    $region47: #{forward.1} parent=1 // pred_check_branch
      %79 = sbr.rel (0) target = $region49
    $region48: #{forward.1} parent=1 // pred_region
      _
    $region49: #{forward.1} parent=1 // pred_fallthru
      _
    // Predicated region
    $region50: #{forward.1} parent=1 // pred_check
      _
    $region51: #{forward.1} parent=1 // pred_check_branch
      %81 = sbr.rel (0) target = $region53
    $region52: #{forward.1} parent=1 // pred_region
      _
    $region53: #{forward.1} parent=1 // pred_fallthru
      _
    // Predicated region
    $region54: #{forward.1} parent=1 // pred_check
      _
    $region55: #{forward.1} parent=1 // pred_check_branch
      %83 = sbr.rel (0) target = $region57
    $region56: #{forward.1} parent=1 // pred_region
      %s85 = ssub.s32 2048, 2048
      %86 = vsyncadd [#allocation8], %s85
      %s87 = sshll.u32 [#allocation7], 4
      %s88 = int_to_ptr.vmem [resolvable:$true] %s87
      %93 = dma.hbm_to_vmem [thread:$0]  %s13, 2048, %s88, [#allocation8], 128, 128, 8
    $region57: #{forward.1} parent=1 // pred_fallthru
      _
    // Predicated region
    $region58: #{forward.1} parent=1 // pred_check
      _
    $region59: #{forward.1} parent=1 // pred_check_branch
      %95 = sbr.rel (0) target = $region61
    $region60: #{forward.1} parent=1 // pred_region
      %s97 = ssub.s32 224, 224
      %98 = vsyncadd [#allocation8], %s97
      %s100 = sshll.u32 [#allocation9], 4
      %s101 = int_to_ptr.vmem [resolvable:$true] %s100
      %103 = dma.hbm_to_vmem [thread:$0]  %s14, 224, %s101, [#allocation8]
    $region61: #{forward.1} parent=1 // pred_fallthru
      _
    // Predicated region
    $region62: #{forward.1} parent=1 // pred_check
      _
    $region63: #{forward.1} parent=1 // pred_check_branch
      %105 = sbr.rel (0) target = $region65
    $region64: #{forward.1} parent=1 // pred_region
      %106 = dma.done [#allocation3], 1024
    $region65: #{forward.1} parent=1 // pred_fallthru
      _
    // Predicated region
    $region66: #{forward.1} parent=1 // pred_check
      _
    $region67: #{forward.1} parent=1 // pred_check_branch
      %108 = sbr.rel (0) target = $region69
    $region68: #{forward.1} parent=1 // pred_region
      %109 = dma.done [#allocation5], 1024
    $region69: #{forward.1} parent=1 // pred_fallthru
      _
    // Predicated region
    $region70: #{forward.1} parent=1 // pred_check
      _
    $region71: #{forward.1} parent=1 // pred_check_branch
      %111 = sbr.rel (0) target = $region73
    $region72: #{forward.1} parent=1 // pred_region
      %112 = dma.done [#allocation5], 1536
    $region73: #{forward.1} parent=1 // pred_fallthru
      _
    // Predicated region
    $region74: #{forward.1} parent=1 // pred_check
      _
    $region75: #{forward.1} parent=1 // pred_check_branch
      %114 = sbr.rel (0) target = $region77
    $region76: #{forward.1} parent=1 // pred_region
      %115 = dma.done [#allocation8], 2048
    $region77: #{forward.1} parent=1 // pred_fallthru
      _
    // Predicated region
    $region78: #{forward.1} parent=1 // pred_check
      _
    $region79: #{forward.1} parent=1 // pred_check_branch
      %117 = sbr.rel (0) target = $region81
    $region80: #{forward.1} parent=1 // pred_region
      %118 = dma.done [#allocation8], 224
    $region81: #{forward.1} parent=1 // pred_fallthru
      _
    %v120 = vld [vmem:[%s0] sm:$0xff]
    %v121 = vld [vmem:[%s0 + $0x8] sm:$0xff]
    %v122 = vld [vmem:[%s0 + $0x10] sm:$0xff]
    %v123 = vld [vmem:[%s0 + $0x18] sm:$0xff]
    %v124 = vld [vmem:[%s0 + $0x20] sm:$0xff]
    %v125 = vld [vmem:[%s0 + $0x28] sm:$0xff]
    %v126 = vld [vmem:[%s0 + $0x30] sm:$0xff]
    %v127 = vld [vmem:[%s0 + $0x38] sm:$0xff]
    %v128 = vld [vmem:[%s0 + $0x40] sm:$0xff]
    %v129 = vld [vmem:[%s0 + $0x48] sm:$0xff]
    %v130 = vld [vmem:[%s0 + $0x50] sm:$0xff]
    %v131 = vld [vmem:[%s0 + $0x58] sm:$0xff]
    %v132 = vld [vmem:[%s0 + $0x60] sm:$0xff]
    %v133 = vld [vmem:[%s0 + $0x68] sm:$0xff]
    %v134 = vld [vmem:[%s0 + $0x70] sm:$0xff]
    %v135 = vld [vmem:[%s0 + $0x78] sm:$0xff]
    %v136 = vld [vmem:[%s1] sm:$0xff]
    %v137 = vld [vmem:[%s1 + $0x8] sm:$0xff]
    %v138 = vld [vmem:[%s1 + $0x10] sm:$0xff]
    %v139 = vld [vmem:[%s1 + $0x18] sm:$0xff]
    %v140 = vld [vmem:[%s1 + $0x20] sm:$0xff]
    %v141 = vld [vmem:[%s1 + $0x28] sm:$0xff]
    %v142 = vld [vmem:[%s1 + $0x30] sm:$0xff]
    %v143 = vld [vmem:[%s1 + $0x38] sm:$0xff]
    %v144 = vld [vmem:[%s1 + $0x40] sm:$0xff]
    %v145 = vld [vmem:[%s1 + $0x48] sm:$0xff]
    %v146 = vld [vmem:[%s1 + $0x50] sm:$0xff]
    %v147 = vld [vmem:[%s1 + $0x58] sm:$0xff]
    %v148 = vld [vmem:[%s1 + $0x60] sm:$0xff]
    %v149 = vld [vmem:[%s1 + $0x68] sm:$0xff]
    %v150 = vld [vmem:[%s1 + $0x70] sm:$0xff]
    %v151 = vld [vmem:[%s1 + $0x78] sm:$0xff]
    %v152 = vld [vmem:[#allocation2] sm:$0xf]
    %v153 = vld [vmem:[#allocation2 + $0x4] sm:$0xf]
    %v154 = vld [vmem:[#allocation2 + $0x8] sm:$0xf]
    %v155 = vld [vmem:[#allocation2 + $0xc] sm:$0xf]
    %v156 = vld [vmem:[#allocation2 + $0x10] sm:$0xf]
    %v157 = vld [vmem:[#allocation2 + $0x14] sm:$0xf]
    %v158 = vld [vmem:[#allocation2 + $0x18] sm:$0xf]
    %v159 = vld [vmem:[#allocation2 + $0x1c] sm:$0xf]
    %v160 = vld [vmem:[#allocation2 + $0x20] sm:$0xf]
    %v161 = vld [vmem:[#allocation2 + $0x24] sm:$0xf]
    %v162 = vld [vmem:[#allocation2 + $0x28] sm:$0xf]
    %v163 = vld [vmem:[#allocation2 + $0x2c] sm:$0xf]
    %v164 = vld [vmem:[#allocation2 + $0x30] sm:$0xf]
    %v165 = vld [vmem:[#allocation2 + $0x34] sm:$0xf]
    %v166 = vld [vmem:[#allocation2 + $0x38] sm:$0xf]
    %v167 = vld [vmem:[#allocation2 + $0x3c] sm:$0xf]
    %v168 = vpack.c.bf16 %v137, %v136
    %v169 = vpack.c.bf16 %v139, %v138
    %v170 = vpack.c.bf16 %v141, %v140
    %v171 = vpack.c.bf16 %v143, %v142
    %v172 = vpack.c.bf16 %v145, %v144
    %v173 = vpack.c.bf16 %v147, %v146
    %v174 = vpack.c.bf16 %v149, %v148
    %v175 = vpack.c.bf16 %v151, %v150
    %v192 = vunpack.c.l.b16 %v152
    %v193 = vunpack.c.l.b16 %v153
    %v194 = vunpack.c.l.b16 %v154
    %v195 = vunpack.c.l.b16 %v155
    %v196 = vunpack.c.l.b16 %v156
    %v197 = vunpack.c.l.b16 %v157
    %v198 = vunpack.c.l.b16 %v158
    %v199 = vunpack.c.l.b16 %v159
    %v200 = vunpack.c.l.b16 %v160
    %v201 = vunpack.c.l.b16 %v161
    %v202 = vunpack.c.l.b16 %v162
    %v203 = vunpack.c.l.b16 %v163
    %v204 = vunpack.c.l.b16 %v164
    %v205 = vunpack.c.l.b16 %v165
    %v206 = vunpack.c.l.b16 %v166
    %v207 = vunpack.c.l.b16 %v167
    %v208 = vpack.c.b16 %v193, %v192
    %v209 = vpack.c.b16 %v195, %v194
    %v210 = vpack.c.b16 %v197, %v196
    %v211 = vpack.c.b16 %v199, %v198
    %v212 = vpack.c.b16 %v201, %v200
    %v213 = vpack.c.b16 %v203, %v202
    %v214 = vpack.c.b16 %v205, %v204
    %v215 = vpack.c.b16 %v207, %v206
    %224 = vmatprep.subr.bf16.mxu0 0
    %225 = vmatpush1.bf16.msra.mxu0 %v208
    %226 = vmatprep.subr.bf16.mxu0 0
    %227 = vmatpush1.bf16.msra.mxu0 %v209
    %228 = vmatprep.subr.bf16.mxu0 0
    %229 = vmatpush1.bf16.msra.mxu0 %v210
    %230 = vmatprep.subr.bf16.mxu0 0
    %231 = vmatpush1.bf16.msra.mxu0 %v211
    %232 = vmatprep.subr.bf16.mxu0 0
    %233 = vmatpush1.bf16.msra.mxu0 %v212
    %234 = vmatprep.subr.bf16.mxu0 0
    %235 = vmatpush1.bf16.msra.mxu0 %v213
    %236 = vmatprep.subr.bf16.mxu0 0
    %237 = vmatpush1.bf16.msra.mxu0 %v214
    %238 = vmatprep.subr.bf16.mxu0 0
    %239 = vmatpush1.bf16.msra.mxu0 %v215
    %240 = vmatprep.subr.bf16.mxu0 0
    %241 = vmatpush1.bf16.msra.mxu0 0
    %242 = vmatprep.subr.bf16.mxu0 0
    %243 = vmatpush1.bf16.msra.mxu0 0
    %244 = vmatprep.subr.bf16.mxu0 0
    %245 = vmatpush1.bf16.msra.mxu0 0
    %246 = vmatprep.subr.bf16.mxu0 0
    %247 = vmatpush1.bf16.msra.mxu0 0
    %248 = vmatprep.subr.bf16.mxu0 0
    %249 = vmatpush1.bf16.msra.mxu0 0
    %250 = vmatprep.subr.bf16.mxu0 0
    %251 = vmatpush1.bf16.msra.mxu0 0
    %252 = vmatprep.subr.bf16.mxu0 0
    %253 = vmatpush1.bf16.msra.mxu0 0
    %254 = vmatprep.subr.bf16.mxu0 0
    %255 = vmatpush1.bf16.msra.mxu0 0
    %256 = vmatprep.mubr.bf16.mxu0 0
    %257 = vmatmul.mubr.bf16.gmra.mrb[0].mxu0 %v168
    %v258 = vpop.f32.mrb[0].mxu0
    %v259 = vadd.f32 0.0, %v258
    %v260 = vpop.f32.mrb[0].mxu0
    %v261 = vpop.f32.mrb[0].mxu0
    %v262 = vadd.f32 0.0, %v261
    %v263 = vpop.f32.mrb[0].mxu0
    %264 = vmatprep.mubr.bf16.mxu0 0
    %265 = vmatmul.mubr.bf16.gmra.mrb[0].mxu0 %v169
    %v266 = vpop.f32.mrb[0].mxu0
    %v267 = vadd.f32 0.0, %v266
    %v268 = vpop.f32.mrb[0].mxu0
    %v269 = vpop.f32.mrb[0].mxu0
    %v270 = vadd.f32 0.0, %v269
    %v271 = vpop.f32.mrb[0].mxu0
    %272 = vmatprep.mubr.bf16.mxu0 0
    %273 = vmatmul.mubr.bf16.gmra.mrb[0].mxu0 %v170
    %v274 = vpop.f32.mrb[0].mxu0
    %v275 = vadd.f32 0.0, %v274
    %v276 = vpop.f32.mrb[0].mxu0
    %v277 = vpop.f32.mrb[0].mxu0
    %v278 = vadd.f32 0.0, %v277
    %v279 = vpop.f32.mrb[0].mxu0
    %280 = vmatprep.mubr.bf16.mxu0 0
    %281 = vmatmul.mubr.bf16.gmra.mrb[0].mxu0 %v171
    %v282 = vpop.f32.mrb[0].mxu0
    %v283 = vadd.f32 0.0, %v282
    %v284 = vpop.f32.mrb[0].mxu0
    %v285 = vpop.f32.mrb[0].mxu0
    %v286 = vadd.f32 0.0, %v285
    %v287 = vpop.f32.mrb[0].mxu0
    %288 = vmatprep.mubr.bf16.mxu0 0
    %289 = vmatmul.mubr.bf16.gmra.mrb[0].mxu0 %v172
    %v290 = vpop.f32.mrb[0].mxu0
    %v291 = vadd.f32 0.0, %v290
    %v292 = vpop.f32.mrb[0].mxu0
    %v293 = vpop.f32.mrb[0].mxu0
    %v294 = vadd.f32 0.0, %v293
    %v295 = vpop.f32.mrb[0].mxu0
    %296 = vmatprep.mubr.bf16.mxu0 0
    %297 = vmatmul.mubr.bf16.gmra.mrb[0].mxu0 %v173
    %v298 = vpop.f32.mrb[0].mxu0
    %v299 = vadd.f32 0.0, %v298
    %v300 = vpop.f32.mrb[0].mxu0
    %v301 = vpop.f32.mrb[0].mxu0
    %v302 = vadd.f32 0.0, %v301
    %v303 = vpop.f32.mrb[0].mxu0
    %304 = vmatprep.mubr.bf16.mxu0 0
    %305 = vmatmul.mubr.bf16.gmra.mrb[0].mxu0 %v174
    %v306 = vpop.f32.mrb[0].mxu0
    %v307 = vadd.f32 0.0, %v306
    %v308 = vpop.f32.mrb[0].mxu0
    %v309 = vpop.f32.mrb[0].mxu0
    %v310 = vadd.f32 0.0, %v309
    %v311 = vpop.f32.mrb[0].mxu0
    %312 = vmatprep.mubr.bf16.mxu0 0
    %313 = vmatmul.mubr.bf16.gmra.mrb[0].mxu0 %v175
    %v314 = vpop.f32.mrb[0].mxu0
    %v315 = vadd.f32 0.0, %v314
    %v316 = vpop.f32.mrb[0].mxu0
    %v317 = vpop.f32.mrb[0].mxu0
    %v318 = vadd.f32 0.0, %v317
    %v319 = vpop.f32.mrb[0].mxu0
    %320 = vdwg.mxu0
    %v321 = vld [vmem:[#allocation9] sm:$0x1]
    %v323 = vlaneseq
    %v324 = vshrl.u32 %v323, 7
    %v325 = vsub.s32 0, %v324
    %v326 = vrot.slane %v321, %v325
    %328 = vmatprep.subr.mxu0 0.0
    %329 = vmatpush1.msra.mxu0 %v259
    %330 = vmatprep.subr.mxu0 0.0
    %331 = vmatpush1.msra.mxu0 %v262
    %332 = vmatprep.subr.mxu0 0.0
    %333 = vmatpush1.msra.mxu0 %v267
    %334 = vmatprep.subr.mxu0 0.0
    %335 = vmatpush1.msra.mxu0 %v270
    %336 = vmatprep.subr.mxu0 0.0
    %337 = vmatpush1.msra.mxu0 %v275
    %338 = vmatprep.subr.mxu0 0.0
    %339 = vmatpush1.msra.mxu0 %v278
    %340 = vmatprep.subr.mxu0 0.0
    %341 = vmatpush1.msra.mxu0 %v283
    %342 = vmatprep.subr.mxu0 0.0
    %343 = vmatpush1.msra.mxu0 %v286
    %344 = vmatprep.subr.mxu0 0.0
    %345 = vmatpush1.msra.mxu0 %v291
    %346 = vmatprep.subr.mxu0 0.0
    %347 = vmatpush1.msra.mxu0 %v294
    %348 = vmatprep.subr.mxu0 0.0
    %349 = vmatpush1.msra.mxu0 %v299
    %350 = vmatprep.subr.mxu0 0.0
    %351 = vmatpush1.msra.mxu0 %v302
    %352 = vmatprep.subr.mxu0 0.0
    %353 = vmatpush1.msra.mxu0 %v307
    %354 = vmatprep.subr.mxu0 0.0
    %355 = vmatpush1.msra.mxu0 %v310
    %356 = vmatprep.subr.mxu0 0.0
    %357 = vmatpush1.msra.mxu0 %v315
    %358 = vmatprep.subr.mxu0 0.0
    %359 = vmatpush1.msra.mxu0 %v318
    %360 = vmatprep.subr.mxu0 0.0
    %361 = vmatpush1.msra.mxu0 0.0
    %362 = vmatprep.subr.mxu0 0.0
    %363 = vmatpush1.msra.mxu0 0.0
    %364 = vmatprep.subr.mxu0 0.0
    %365 = vmatpush1.msra.mxu0 0.0
    %366 = vmatprep.subr.mxu0 0.0
    %367 = vmatpush1.msra.mxu0 0.0
    %368 = vmatprep.subr.mxu0 0.0
    %369 = vmatpush1.msra.mxu0 0.0
    %370 = vmatprep.subr.mxu0 0.0
    %371 = vmatpush1.msra.mxu0 0.0
    %372 = vmatprep.subr.mxu0 0.0
    %373 = vmatpush1.msra.mxu0 0.0
    %374 = vmatprep.subr.mxu0 0.0
    %375 = vmatpush1.msra.mxu0 0.0
    %376 = vmatprep.subr.mxu0 0.0
    %377 = vmatpush1.msra.mxu0 0.0
    %378 = vmatprep.subr.mxu0 0.0
    %379 = vmatpush1.msra.mxu0 0.0
    %380 = vmatprep.subr.mxu0 0.0
    %381 = vmatpush1.msra.mxu0 0.0
    %382 = vmatprep.subr.mxu0 0.0
    %383 = vmatpush1.msra.mxu0 0.0
    %384 = vmatprep.subr.mxu0 0.0
    %385 = vmatpush1.msra.mxu0 0.0
    %386 = vmatprep.subr.mxu0 0.0
    %387 = vmatpush1.msra.mxu0 0.0
    %388 = vmatprep.subr.mxu0 0.0
    %389 = vmatpush1.msra.mxu0 0.0
    %390 = vmatprep.subr.mxu0 0.0
    %391 = vmatpush1.msra.mxu0 0.0
    %392 = vmatprep.mubr.f32.mxu0 0.0
    %393 = vmatmul.mubr.f32.gmra.mrb[0].mxu0 %v120
    %v394 = vpop.f32.mrb[0].mxu0
    %v395 = vadd.f32 %v326, %v394
    %v396 = vpop.f32.mrb[0].mxu0
    %397 = vmatprep.mubr.f32.mxu0 0.0
    %398 = vmatmul.mubr.f32.gmra.mrb[0].mxu0 %v121
    %v399 = vpop.f32.mrb[0].mxu0
    %v400 = vadd.f32 %v326, %v399
    %v401 = vpop.f32.mrb[0].mxu0
    %402 = vmatprep.mubr.f32.mxu0 0.0
    %403 = vmatmul.mubr.f32.gmra.mrb[0].mxu0 %v122
    %v404 = vpop.f32.mrb[0].mxu0
    %v405 = vadd.f32 %v326, %v404
    %v406 = vpop.f32.mrb[0].mxu0
    %407 = vmatprep.mubr.f32.mxu0 0.0
    %408 = vmatmul.mubr.f32.gmra.mrb[0].mxu0 %v123
    %v409 = vpop.f32.mrb[0].mxu0
    %v410 = vadd.f32 %v326, %v409
    %v411 = vpop.f32.mrb[0].mxu0
    %412 = vmatprep.mubr.f32.mxu0 0.0
    %413 = vmatmul.mubr.f32.gmra.mrb[0].mxu0 %v124
    %v414 = vpop.f32.mrb[0].mxu0
    %v415 = vadd.f32 %v326, %v414
    %v416 = vpop.f32.mrb[0].mxu0
    %417 = vmatprep.mubr.f32.mxu0 0.0
    %418 = vmatmul.mubr.f32.gmra.mrb[0].mxu0 %v125
    %v419 = vpop.f32.mrb[0].mxu0
    %v420 = vadd.f32 %v326, %v419
    %v421 = vpop.f32.mrb[0].mxu0
    %422 = vmatprep.mubr.f32.mxu0 0.0
    %423 = vmatmul.mubr.f32.gmra.mrb[0].mxu0 %v126
    %v424 = vpop.f32.mrb[0].mxu0
    %v425 = vadd.f32 %v326, %v424
    %v426 = vpop.f32.mrb[0].mxu0
    %427 = vmatprep.mubr.f32.mxu0 0.0
    %428 = vmatmul.mubr.f32.gmra.mrb[0].mxu0 %v127
    %v429 = vpop.f32.mrb[0].mxu0
    %v430 = vadd.f32 %v326, %v429
    %v431 = vpop.f32.mrb[0].mxu0
    %432 = vmatprep.mubr.f32.mxu0 0.0
    %433 = vmatmul.mubr.f32.gmra.mrb[0].mxu0 %v128
    %v434 = vpop.f32.mrb[0].mxu0
    %v435 = vadd.f32 %v326, %v434
    %v436 = vpop.f32.mrb[0].mxu0
    %437 = vmatprep.mubr.f32.mxu0 0.0
    %438 = vmatmul.mubr.f32.gmra.mrb[0].mxu0 %v129
    %v439 = vpop.f32.mrb[0].mxu0
    %v440 = vadd.f32 %v326, %v439
    %v441 = vpop.f32.mrb[0].mxu0
    %442 = vmatprep.mubr.f32.mxu0 0.0
    %443 = vmatmul.mubr.f32.gmra.mrb[0].mxu0 %v130
    %v444 = vpop.f32.mrb[0].mxu0
    %v445 = vadd.f32 %v326, %v444
    %v446 = vpop.f32.mrb[0].mxu0
    %447 = vmatprep.mubr.f32.mxu0 0.0
    %448 = vmatmul.mubr.f32.gmra.mrb[0].mxu0 %v131
    %v449 = vpop.f32.mrb[0].mxu0
    %v450 = vadd.f32 %v326, %v449
    %v451 = vpop.f32.mrb[0].mxu0
    %452 = vmatprep.mubr.f32.mxu0 0.0
    %453 = vmatmul.mubr.f32.gmra.mrb[0].mxu0 %v132
    %v454 = vpop.f32.mrb[0].mxu0
    %v455 = vadd.f32 %v326, %v454
    %v456 = vpop.f32.mrb[0].mxu0
    %457 = vmatprep.mubr.f32.mxu0 0.0
    %458 = vmatmul.mubr.f32.gmra.mrb[0].mxu0 %v133
    %v459 = vpop.f32.mrb[0].mxu0
    %v460 = vadd.f32 %v326, %v459
    %v461 = vpop.f32.mrb[0].mxu0
    %462 = vmatprep.mubr.f32.mxu0 0.0
    %463 = vmatmul.mubr.f32.gmra.mrb[0].mxu0 %v134
    %v464 = vpop.f32.mrb[0].mxu0
    %v465 = vadd.f32 %v326, %v464
    %v466 = vpop.f32.mrb[0].mxu0
    %467 = vmatprep.mubr.f32.mxu0 0.0
    %468 = vmatmul.mubr.f32.gmra.mrb[0].mxu0 %v135
    %v469 = vpop.f32.mrb[0].mxu0
    %v470 = vadd.f32 %v326, %v469
    %v471 = vpop.f32.mrb[0].mxu0
    %472 = vdwg.mxu0
    %v473 = vmax.f32 %v395, 0.0
    %v474 = vmax.f32 %v400, 0.0
    %v475 = vmax.f32 %v405, 0.0
    %v476 = vmax.f32 %v410, 0.0
    %v477 = vmax.f32 %v415, 0.0
    %v478 = vmax.f32 %v420, 0.0
    %v479 = vmax.f32 %v425, 0.0
    %v480 = vmax.f32 %v430, 0.0
    %v481 = vmax.f32 %v435, 0.0
    %v482 = vmax.f32 %v440, 0.0
    %v483 = vmax.f32 %v445, 0.0
    %v484 = vmax.f32 %v450, 0.0
    %v485 = vmax.f32 %v455, 0.0
    %v486 = vmax.f32 %v460, 0.0
    %v487 = vmax.f32 %v465, 0.0
    %v488 = vmax.f32 %v470, 0.0
    %v489 = vld [vmem:[#allocation4] sm:$0xf]
    %v490 = vld [vmem:[#allocation4 + $0x4] sm:$0xf]
    %v491 = vld [vmem:[#allocation4 + $0x8] sm:$0xf]
    %v492 = vld [vmem:[#allocation4 + $0xc] sm:$0xf]
    %v493 = vld [vmem:[#allocation4 + $0x10] sm:$0xf]
    %v494 = vld [vmem:[#allocation4 + $0x14] sm:$0xf]
    %v495 = vld [vmem:[#allocation4 + $0x18] sm:$0xf]
    %v496 = vld [vmem:[#allocation4 + $0x1c] sm:$0xf]
    %v497 = vld [vmem:[#allocation4 + $0x20] sm:$0xf]
    %v498 = vld [vmem:[#allocation4 + $0x24] sm:$0xf]
    %v499 = vld [vmem:[#allocation4 + $0x28] sm:$0xf]
    %v500 = vld [vmem:[#allocation4 + $0x2c] sm:$0xf]
    %v501 = vld [vmem:[#allocation4 + $0x30] sm:$0xf]
    %v502 = vld [vmem:[#allocation4 + $0x34] sm:$0xf]
    %v503 = vld [vmem:[#allocation4 + $0x38] sm:$0xf]
    %v504 = vld [vmem:[#allocation4 + $0x3c] sm:$0xf]
    %v505 = vpack.c.bf16 %v474, %v473
    %v506 = vpack.c.bf16 %v476, %v475
    %v507 = vpack.c.bf16 %v478, %v477
    %v508 = vpack.c.bf16 %v480, %v479
    %v509 = vpack.c.bf16 %v482, %v481
    %v510 = vpack.c.bf16 %v484, %v483
    %v511 = vpack.c.bf16 %v486, %v485
    %v512 = vpack.c.bf16 %v488, %v487
    %v529 = vunpack.c.l.b16 %v489
    %v530 = vunpack.c.l.b16 %v490
    %v531 = vunpack.c.l.b16 %v491
    %v532 = vunpack.c.l.b16 %v492
    %v533 = vunpack.c.l.b16 %v493
    %v534 = vunpack.c.l.b16 %v494
    %v535 = vunpack.c.l.b16 %v495
    %v536 = vunpack.c.l.b16 %v496
    %v537 = vunpack.c.l.b16 %v497
    %v538 = vunpack.c.l.b16 %v498
    %v539 = vunpack.c.l.b16 %v499
    %v540 = vunpack.c.l.b16 %v500
    %v541 = vunpack.c.l.b16 %v501
    %v542 = vunpack.c.l.b16 %v502
    %v543 = vunpack.c.l.b16 %v503
    %v544 = vunpack.c.l.b16 %v504
    %v545 = vpack.c.b16 %v530, %v529
    %v546 = vpack.c.b16 %v532, %v531
    %v547 = vpack.c.b16 %v534, %v533
    %v548 = vpack.c.b16 %v536, %v535
    %v549 = vpack.c.b16 %v538, %v537
    %v550 = vpack.c.b16 %v540, %v539
    %v551 = vpack.c.b16 %v542, %v541
    %v552 = vpack.c.b16 %v544, %v543
    %561 = vmatprep.subr.bf16.mxu0 0
    %562 = vmatpush1.bf16.msra.mxu0 %v545
    %563 = vmatprep.subr.bf16.mxu0 0
    %564 = vmatpush1.bf16.msra.mxu0 %v546
    %565 = vmatprep.subr.bf16.mxu0 0
    %566 = vmatpush1.bf16.msra.mxu0 %v547
    %567 = vmatprep.subr.bf16.mxu0 0
    %568 = vmatpush1.bf16.msra.mxu0 %v548
    %569 = vmatprep.subr.bf16.mxu0 0
    %570 = vmatpush1.bf16.msra.mxu0 %v549
    %571 = vmatprep.subr.bf16.mxu0 0
    %572 = vmatpush1.bf16.msra.mxu0 %v550
    %573 = vmatprep.subr.bf16.mxu0 0
    %574 = vmatpush1.bf16.msra.mxu0 %v551
    %575 = vmatprep.subr.bf16.mxu0 0
    %576 = vmatpush1.bf16.msra.mxu0 %v552
    %577 = vmatprep.subr.bf16.mxu0 0
    %578 = vmatpush1.bf16.msra.mxu0 0
    %579 = vmatprep.subr.bf16.mxu0 0
    %580 = vmatpush1.bf16.msra.mxu0 0
    %581 = vmatprep.subr.bf16.mxu0 0
    %582 = vmatpush1.bf16.msra.mxu0 0
    %583 = vmatprep.subr.bf16.mxu0 0
    %584 = vmatpush1.bf16.msra.mxu0 0
    %585 = vmatprep.subr.bf16.mxu0 0
    %586 = vmatpush1.bf16.msra.mxu0 0
    %587 = vmatprep.subr.bf16.mxu0 0
    %588 = vmatpush1.bf16.msra.mxu0 0
    %589 = vmatprep.subr.bf16.mxu0 0
    %590 = vmatpush1.bf16.msra.mxu0 0
    %591 = vmatprep.subr.bf16.mxu0 0
    %592 = vmatpush1.bf16.msra.mxu0 0
    %593 = vmatprep.mubr.bf16.mxu0 0
    %594 = vmatmul.mubr.bf16.gmra.mrb[0].mxu0 %v505
    %v595 = vpop.f32.mrb[0].mxu0
    %v596 = vadd.f32 0.0, %v595
    %v597 = vpop.f32.mrb[0].mxu0
    %v598 = vpop.f32.mrb[0].mxu0
    %v599 = vadd.f32 0.0, %v598
    %v600 = vpop.f32.mrb[0].mxu0
    %601 = vmatprep.mubr.bf16.mxu0 0
    %602 = vmatmul.mubr.bf16.gmra.mrb[0].mxu0 %v506
    %v603 = vpop.f32.mrb[0].mxu0
    %v604 = vadd.f32 0.0, %v603
    %v605 = vpop.f32.mrb[0].mxu0
    %v606 = vpop.f32.mrb[0].mxu0
    %v607 = vadd.f32 0.0, %v606
    %v608 = vpop.f32.mrb[0].mxu0
    %609 = vmatprep.mubr.bf16.mxu0 0
    %610 = vmatmul.mubr.bf16.gmra.mrb[0].mxu0 %v507
    %v611 = vpop.f32.mrb[0].mxu0
    %v612 = vadd.f32 0.0, %v611
    %v613 = vpop.f32.mrb[0].mxu0
    %v614 = vpop.f32.mrb[0].mxu0
    %v615 = vadd.f32 0.0, %v614
    %v616 = vpop.f32.mrb[0].mxu0
    %617 = vmatprep.mubr.bf16.mxu0 0
    %618 = vmatmul.mubr.bf16.gmra.mrb[0].mxu0 %v508
    %v619 = vpop.f32.mrb[0].mxu0
    %v620 = vadd.f32 0.0, %v619
    %v621 = vpop.f32.mrb[0].mxu0
    %v622 = vpop.f32.mrb[0].mxu0
    %v623 = vadd.f32 0.0, %v622
    %v624 = vpop.f32.mrb[0].mxu0
    %625 = vmatprep.mubr.bf16.mxu0 0
    %626 = vmatmul.mubr.bf16.gmra.mrb[0].mxu0 %v509
    %v627 = vpop.f32.mrb[0].mxu0
    %v628 = vadd.f32 0.0, %v627
    %v629 = vpop.f32.mrb[0].mxu0
    %v630 = vpop.f32.mrb[0].mxu0
    %v631 = vadd.f32 0.0, %v630
    %v632 = vpop.f32.mrb[0].mxu0
    %633 = vmatprep.mubr.bf16.mxu0 0
    %634 = vmatmul.mubr.bf16.gmra.mrb[0].mxu0 %v510
    %v635 = vpop.f32.mrb[0].mxu0
    %v636 = vadd.f32 0.0, %v635
    %v637 = vpop.f32.mrb[0].mxu0
    %v638 = vpop.f32.mrb[0].mxu0
    %v639 = vadd.f32 0.0, %v638
    %v640 = vpop.f32.mrb[0].mxu0
    %641 = vmatprep.mubr.bf16.mxu0 0
    %642 = vmatmul.mubr.bf16.gmra.mrb[0].mxu0 %v511
    %v643 = vpop.f32.mrb[0].mxu0
    %v644 = vadd.f32 0.0, %v643
    %v645 = vpop.f32.mrb[0].mxu0
    %v646 = vpop.f32.mrb[0].mxu0
    %v647 = vadd.f32 0.0, %v646
    %v648 = vpop.f32.mrb[0].mxu0
    %649 = vmatprep.mubr.bf16.mxu0 0
    %650 = vmatmul.mubr.bf16.gmra.mrb[0].mxu0 %v512
    %v651 = vpop.f32.mrb[0].mxu0
    %v652 = vadd.f32 0.0, %v651
    %v653 = vpop.f32.mrb[0].mxu0
    %v654 = vpop.f32.mrb[0].mxu0
    %v655 = vadd.f32 0.0, %v654
    %v656 = vpop.f32.mrb[0].mxu0
    %657 = vdwg.mxu0
    %v658 = vld [vmem:[#allocation9 + $0x1] sm:$0x1]
    %v660 = vlaneseq
    %v661 = vshrl.u32 %v660, 7
    %v662 = vsub.s32 0, %v661
    %v663 = vrot.slane %v658, %v662
    %665 = vmatprep.subr.mxu0 0.0
    %666 = vmatpush1.msra.mxu0 %v596
    %667 = vmatprep.subr.mxu0 0.0
    %668 = vmatpush1.msra.mxu0 %v599
    %669 = vmatprep.subr.mxu0 0.0
    %670 = vmatpush1.msra.mxu0 %v604
    %671 = vmatprep.subr.mxu0 0.0
    %672 = vmatpush1.msra.mxu0 %v607
    %673 = vmatprep.subr.mxu0 0.0
    %674 = vmatpush1.msra.mxu0 %v612
    %675 = vmatprep.subr.mxu0 0.0
    %676 = vmatpush1.msra.mxu0 %v615
    %677 = vmatprep.subr.mxu0 0.0
    %678 = vmatpush1.msra.mxu0 %v620
    %679 = vmatprep.subr.mxu0 0.0
    %680 = vmatpush1.msra.mxu0 %v623
    %681 = vmatprep.subr.mxu0 0.0
    %682 = vmatpush1.msra.mxu0 %v628
    %683 = vmatprep.subr.mxu0 0.0
    %684 = vmatpush1.msra.mxu0 %v631
    %685 = vmatprep.subr.mxu0 0.0
    %686 = vmatpush1.msra.mxu0 %v636
    %687 = vmatprep.subr.mxu0 0.0
    %688 = vmatpush1.msra.mxu0 %v639
    %689 = vmatprep.subr.mxu0 0.0
    %690 = vmatpush1.msra.mxu0 %v644
    %691 = vmatprep.subr.mxu0 0.0
    %692 = vmatpush1.msra.mxu0 %v647
    %693 = vmatprep.subr.mxu0 0.0
    %694 = vmatpush1.msra.mxu0 %v652
    %695 = vmatprep.subr.mxu0 0.0
    %696 = vmatpush1.msra.mxu0 %v655
    %697 = vmatprep.subr.mxu0 0.0
    %698 = vmatpush1.msra.mxu0 0.0
    %699 = vmatprep.subr.mxu0 0.0
    %700 = vmatpush1.msra.mxu0 0.0
    %701 = vmatprep.subr.mxu0 0.0
    %702 = vmatpush1.msra.mxu0 0.0
    %703 = vmatprep.subr.mxu0 0.0
    %704 = vmatpush1.msra.mxu0 0.0
    %705 = vmatprep.subr.mxu0 0.0
    %706 = vmatpush1.msra.mxu0 0.0
    %707 = vmatprep.subr.mxu0 0.0
    %708 = vmatpush1.msra.mxu0 0.0
    %709 = vmatprep.subr.mxu0 0.0
    %710 = vmatpush1.msra.mxu0 0.0
    %711 = vmatprep.subr.mxu0 0.0
    %712 = vmatpush1.msra.mxu0 0.0
    %713 = vmatprep.subr.mxu0 0.0
    %714 = vmatpush1.msra.mxu0 0.0
    %715 = vmatprep.subr.mxu0 0.0
    %716 = vmatpush1.msra.mxu0 0.0
    %717 = vmatprep.subr.mxu0 0.0
    %718 = vmatpush1.msra.mxu0 0.0
    %719 = vmatprep.subr.mxu0 0.0
    %720 = vmatpush1.msra.mxu0 0.0
    %721 = vmatprep.subr.mxu0 0.0
    %722 = vmatpush1.msra.mxu0 0.0
    %723 = vmatprep.subr.mxu0 0.0
    %724 = vmatpush1.msra.mxu0 0.0
    %725 = vmatprep.subr.mxu0 0.0
    %726 = vmatpush1.msra.mxu0 0.0
    %727 = vmatprep.subr.mxu0 0.0
    %728 = vmatpush1.msra.mxu0 0.0
    %729 = vmatprep.mubr.f32.mxu0 0.0
    %730 = vmatmul.mubr.f32.gmra.mrb[0].mxu0 %v120
    %v731 = vpop.f32.mrb[0].mxu0
    %v732 = vadd.f32 %v663, %v731
    %v733 = vpop.f32.mrb[0].mxu0
    %734 = vmatprep.mubr.f32.mxu0 0.0
    %735 = vmatmul.mubr.f32.gmra.mrb[0].mxu0 %v121
    %v736 = vpop.f32.mrb[0].mxu0
    %v737 = vadd.f32 %v663, %v736
    %v738 = vpop.f32.mrb[0].mxu0
    %739 = vmatprep.mubr.f32.mxu0 0.0
    %740 = vmatmul.mubr.f32.gmra.mrb[0].mxu0 %v122
    %v741 = vpop.f32.mrb[0].mxu0
    %v742 = vadd.f32 %v663, %v741
    %v743 = vpop.f32.mrb[0].mxu0
    %744 = vmatprep.mubr.f32.mxu0 0.0
    %745 = vmatmul.mubr.f32.gmra.mrb[0].mxu0 %v123
    %v746 = vpop.f32.mrb[0].mxu0
    %v747 = vadd.f32 %v663, %v746
    %v748 = vpop.f32.mrb[0].mxu0
    %749 = vmatprep.mubr.f32.mxu0 0.0
    %750 = vmatmul.mubr.f32.gmra.mrb[0].mxu0 %v124
    %v751 = vpop.f32.mrb[0].mxu0
    %v752 = vadd.f32 %v663, %v751
    %v753 = vpop.f32.mrb[0].mxu0
    %754 = vmatprep.mubr.f32.mxu0 0.0
    %755 = vmatmul.mubr.f32.gmra.mrb[0].mxu0 %v125
    %v756 = vpop.f32.mrb[0].mxu0
    %v757 = vadd.f32 %v663, %v756
    %v758 = vpop.f32.mrb[0].mxu0
    %759 = vmatprep.mubr.f32.mxu0 0.0
    %760 = vmatmul.mubr.f32.gmra.mrb[0].mxu0 %v126
    %v761 = vpop.f32.mrb[0].mxu0
    %v762 = vadd.f32 %v663, %v761
    %v763 = vpop.f32.mrb[0].mxu0
    %764 = vmatprep.mubr.f32.mxu0 0.0
    %765 = vmatmul.mubr.f32.gmra.mrb[0].mxu0 %v127
    %v766 = vpop.f32.mrb[0].mxu0
    %v767 = vadd.f32 %v663, %v766
    %v768 = vpop.f32.mrb[0].mxu0
    %769 = vmatprep.mubr.f32.mxu0 0.0
    %770 = vmatmul.mubr.f32.gmra.mrb[0].mxu0 %v128
    %v771 = vpop.f32.mrb[0].mxu0
    %v772 = vadd.f32 %v663, %v771
    %v773 = vpop.f32.mrb[0].mxu0
    %774 = vmatprep.mubr.f32.mxu0 0.0
    %775 = vmatmul.mubr.f32.gmra.mrb[0].mxu0 %v129
    %v776 = vpop.f32.mrb[0].mxu0
    %v777 = vadd.f32 %v663, %v776
    %v778 = vpop.f32.mrb[0].mxu0
    %779 = vmatprep.mubr.f32.mxu0 0.0
    %780 = vmatmul.mubr.f32.gmra.mrb[0].mxu0 %v130
    %v781 = vpop.f32.mrb[0].mxu0
    %v782 = vadd.f32 %v663, %v781
    %v783 = vpop.f32.mrb[0].mxu0
    %784 = vmatprep.mubr.f32.mxu0 0.0
    %785 = vmatmul.mubr.f32.gmra.mrb[0].mxu0 %v131
    %v786 = vpop.f32.mrb[0].mxu0
    %v787 = vadd.f32 %v663, %v786
    %v788 = vpop.f32.mrb[0].mxu0
    %789 = vmatprep.mubr.f32.mxu0 0.0
    %790 = vmatmul.mubr.f32.gmra.mrb[0].mxu0 %v132
    %v791 = vpop.f32.mrb[0].mxu0
    %v792 = vadd.f32 %v663, %v791
    %v793 = vpop.f32.mrb[0].mxu0
    %794 = vmatprep.mubr.f32.mxu0 0.0
    %795 = vmatmul.mubr.f32.gmra.mrb[0].mxu0 %v133
    %v796 = vpop.f32.mrb[0].mxu0
    %v797 = vadd.f32 %v663, %v796
    %v798 = vpop.f32.mrb[0].mxu0
    %799 = vmatprep.mubr.f32.mxu0 0.0
    %800 = vmatmul.mubr.f32.gmra.mrb[0].mxu0 %v134
    %v801 = vpop.f32.mrb[0].mxu0
    %v802 = vadd.f32 %v663, %v801
    %v803 = vpop.f32.mrb[0].mxu0
    %804 = vmatprep.mubr.f32.mxu0 0.0
    %805 = vmatmul.mubr.f32.gmra.mrb[0].mxu0 %v135
    %v806 = vpop.f32.mrb[0].mxu0
    %v807 = vadd.f32 %v663, %v806
    %v808 = vpop.f32.mrb[0].mxu0
    %809 = vdwg.mxu0
    %v810 = vlaneseq
    %v811 = vand.u32 %v810, 127
    %vm812 = vcmp.lt.s32.totalorder %v811, 64
    %v813 = vsel %vm812, 1, 0
    %v814 = vcvt.s32.f32 %v813
    %815 = vadd.xlane.f32.xlu0 %v732
    %v816 = vpop.xlane.xlu0 %815
    %817 = vadd.xlane.f32.xlu0 %v737
    %v818 = vpop.xlane.xlu0 %817
    %819 = vadd.xlane.f32.xlu0 %v742
    %v820 = vpop.xlane.xlu0 %819
    %821 = vadd.xlane.f32.xlu0 %v747
    %v822 = vpop.xlane.xlu0 %821
    %823 = vadd.xlane.f32.xlu0 %v752
    %v824 = vpop.xlane.xlu0 %823
    %825 = vadd.xlane.f32.xlu0 %v757
    %v826 = vpop.xlane.xlu0 %825
    %827 = vadd.xlane.f32.xlu0 %v762
    %v828 = vpop.xlane.xlu0 %827
    %829 = vadd.xlane.f32.xlu0 %v767
    %v830 = vpop.xlane.xlu0 %829
    %831 = vadd.xlane.f32.xlu0 %v772
    %v832 = vpop.xlane.xlu0 %831
    %833 = vadd.xlane.f32.xlu0 %v777
    %v834 = vpop.xlane.xlu0 %833
    %835 = vadd.xlane.f32.xlu0 %v782
    %v836 = vpop.xlane.xlu0 %835
    %837 = vadd.xlane.f32.xlu0 %v787
    %v838 = vpop.xlane.xlu0 %837
    %839 = vadd.xlane.f32.xlu0 %v792
    %v840 = vpop.xlane.xlu0 %839
    %841 = vadd.xlane.f32.xlu0 %v797
    %v842 = vpop.xlane.xlu0 %841
    %843 = vadd.xlane.f32.xlu0 %v802
    %v844 = vpop.xlane.xlu0 %843
    %845 = vadd.xlane.f32.xlu0 %v807
    %v846 = vpop.xlane.xlu0 %845
    %v847 = vmul.f32 %v816, 0.015625
    %v848 = vmul.f32 %v818, 0.015625
    %v849 = vmul.f32 %v820, 0.015625
    %v850 = vmul.f32 %v822, 0.015625
    %v851 = vmul.f32 %v824, 0.015625
    %v852 = vmul.f32 %v826, 0.015625
    %v853 = vmul.f32 %v828, 0.015625
    %v854 = vmul.f32 %v830, 0.015625
    %v855 = vmul.f32 %v832, 0.015625
    %v856 = vmul.f32 %v834, 0.015625
    %v857 = vmul.f32 %v836, 0.015625
    %v858 = vmul.f32 %v838, 0.015625
    %v859 = vmul.f32 %v840, 0.015625
    %v860 = vmul.f32 %v842, 0.015625
    %v861 = vmul.f32 %v844, 0.015625
    %v862 = vmul.f32 %v846, 0.015625
    %v863 = vsub.f32 %v732, %v847
    %v864 = vsub.f32 %v737, %v848
    %v865 = vsub.f32 %v742, %v849
    %v866 = vsub.f32 %v747, %v850
    %v867 = vsub.f32 %v752, %v851
    %v868 = vsub.f32 %v757, %v852
    %v869 = vsub.f32 %v762, %v853
    %v870 = vsub.f32 %v767, %v854
    %v871 = vsub.f32 %v772, %v855
    %v872 = vsub.f32 %v777, %v856
    %v873 = vsub.f32 %v782, %v857
    %v874 = vsub.f32 %v787, %v858
    %v875 = vsub.f32 %v792, %v859
    %v876 = vsub.f32 %v797, %v860
    %v877 = vsub.f32 %v802, %v861
    %v878 = vsub.f32 %v807, %v862
    %v879 = vmul.f32 %v863, %v814
    %v880 = vmul.f32 %v864, %v814
    %v881 = vmul.f32 %v865, %v814
    %v882 = vmul.f32 %v866, %v814
    %v883 = vmul.f32 %v867, %v814
    %v884 = vmul.f32 %v868, %v814
    %v885 = vmul.f32 %v869, %v814
    %v886 = vmul.f32 %v870, %v814
    %v887 = vmul.f32 %v871, %v814
    %v888 = vmul.f32 %v872, %v814
    %v889 = vmul.f32 %v873, %v814
    %v890 = vmul.f32 %v874, %v814
    %v891 = vmul.f32 %v875, %v814
    %v892 = vmul.f32 %v876, %v814
    %v893 = vmul.f32 %v877, %v814
    %v894 = vmul.f32 %v878, %v814
    %v895 = vmul.f32 %v879, %v879
    %v896 = vmul.f32 %v880, %v880
    %v897 = vmul.f32 %v881, %v881
    %v898 = vmul.f32 %v882, %v882
    %v899 = vmul.f32 %v883, %v883
    %v900 = vmul.f32 %v884, %v884
    %v901 = vmul.f32 %v885, %v885
    %v902 = vmul.f32 %v886, %v886
    %v903 = vmul.f32 %v887, %v887
    %v904 = vmul.f32 %v888, %v888
    %v905 = vmul.f32 %v889, %v889
    %v906 = vmul.f32 %v890, %v890
    %v907 = vmul.f32 %v891, %v891
    %v908 = vmul.f32 %v892, %v892
    %v909 = vmul.f32 %v893, %v893
    %v910 = vmul.f32 %v894, %v894
    %911 = vadd.xlane.f32.xlu0 %v895
    %v912 = vpop.xlane.xlu0 %911
    %913 = vadd.xlane.f32.xlu0 %v896
    %v914 = vpop.xlane.xlu0 %913
    %915 = vadd.xlane.f32.xlu0 %v897
    %v916 = vpop.xlane.xlu0 %915
    %917 = vadd.xlane.f32.xlu0 %v898
    %v918 = vpop.xlane.xlu0 %917
    %919 = vadd.xlane.f32.xlu0 %v899
    %v920 = vpop.xlane.xlu0 %919
    %921 = vadd.xlane.f32.xlu0 %v900
    %v922 = vpop.xlane.xlu0 %921
    %923 = vadd.xlane.f32.xlu0 %v901
    %v924 = vpop.xlane.xlu0 %923
    %925 = vadd.xlane.f32.xlu0 %v902
    %v926 = vpop.xlane.xlu0 %925
    %927 = vadd.xlane.f32.xlu0 %v903
    %v928 = vpop.xlane.xlu0 %927
    %929 = vadd.xlane.f32.xlu0 %v904
    %v930 = vpop.xlane.xlu0 %929
    %931 = vadd.xlane.f32.xlu0 %v905
    %v932 = vpop.xlane.xlu0 %931
    %933 = vadd.xlane.f32.xlu0 %v906
    %v934 = vpop.xlane.xlu0 %933
    %935 = vadd.xlane.f32.xlu0 %v907
    %v936 = vpop.xlane.xlu0 %935
    %937 = vadd.xlane.f32.xlu0 %v908
    %v938 = vpop.xlane.xlu0 %937
    %939 = vadd.xlane.f32.xlu0 %v909
    %v940 = vpop.xlane.xlu0 %939
    %941 = vadd.xlane.f32.xlu0 %v910
    %v942 = vpop.xlane.xlu0 %941
    %v943 = vmul.f32 %v912, 0.015625
    %v944 = vmul.f32 %v914, 0.015625
    %v945 = vmul.f32 %v916, 0.015625
    %v946 = vmul.f32 %v918, 0.015625
    %v947 = vmul.f32 %v920, 0.015625
    %v948 = vmul.f32 %v922, 0.015625
    %v949 = vmul.f32 %v924, 0.015625
    %v950 = vmul.f32 %v926, 0.015625
    %v951 = vmul.f32 %v928, 0.015625
    %v952 = vmul.f32 %v930, 0.015625
    %v953 = vmul.f32 %v932, 0.015625
    %v954 = vmul.f32 %v934, 0.015625
    %v955 = vmul.f32 %v936, 0.015625
    %v956 = vmul.f32 %v938, 0.015625
    %v957 = vmul.f32 %v940, 0.015625
    %v958 = vmul.f32 %v942, 0.015625
    %v959 = vadd.f32 %v943, 1e-05
    %v960 = vadd.f32 %v944, 1e-05
    %v961 = vadd.f32 %v945, 1e-05
    %v962 = vadd.f32 %v946, 1e-05
    %v963 = vadd.f32 %v947, 1e-05
    %v964 = vadd.f32 %v948, 1e-05
    %v965 = vadd.f32 %v949, 1e-05
    %v966 = vadd.f32 %v950, 1e-05
    %v967 = vadd.f32 %v951, 1e-05
    %v968 = vadd.f32 %v952, 1e-05
    %v969 = vadd.f32 %v953, 1e-05
    %v970 = vadd.f32 %v954, 1e-05
    %v971 = vadd.f32 %v955, 1e-05
    %v972 = vadd.f32 %v956, 1e-05
    %v973 = vadd.f32 %v957, 1e-05
    %v974 = vadd.f32 %v958, 1e-05
    %v975 = vrsqrt.pop %v959
    %v976 = vrsqrt.pop %v960
    %v977 = vrsqrt.pop %v961
    %v978 = vrsqrt.pop %v962
    %v979 = vrsqrt.pop %v963
    %v980 = vrsqrt.pop %v964
    %v981 = vrsqrt.pop %v965
    %v982 = vrsqrt.pop %v966
    %v983 = vrsqrt.pop %v967
    %v984 = vrsqrt.pop %v968
    %v985 = vrsqrt.pop %v969
    %v986 = vrsqrt.pop %v970
    %v987 = vrsqrt.pop %v971
    %v988 = vrsqrt.pop %v972
    %v989 = vrsqrt.pop %v973
    %v990 = vrsqrt.pop %v974
    %v991 = vmul.f32 %v879, %v975
    %v992 = vmul.f32 %v880, %v976
    %v993 = vmul.f32 %v881, %v977
    %v994 = vmul.f32 %v882, %v978
    %v995 = vmul.f32 %v883, %v979
    %v996 = vmul.f32 %v884, %v980
    %v997 = vmul.f32 %v885, %v981
    %v998 = vmul.f32 %v886, %v982
    %v999 = vmul.f32 %v887, %v983
    %v1000 = vmul.f32 %v888, %v984
    %v1001 = vmul.f32 %v889, %v985
    %v1002 = vmul.f32 %v890, %v986
    %v1003 = vmul.f32 %v891, %v987
    %v1004 = vmul.f32 %v892, %v988
    %v1005 = vmul.f32 %v893, %v989
    %v1006 = vmul.f32 %v894, %v990
    %v1007 = vld [vmem:[#allocation9 + $0x2] sm:$0x1]
    %v1009 = vlaneseq
    %v1010 = vshrl.u32 %v1009, 7
    %v1011 = vsub.s32 0, %v1010
    %v1012 = vrot.slane %v1007, %v1011
    %v1014 = vmul.f32 %v991, %v1012
    %v1015 = vmul.f32 %v992, %v1012
    %v1016 = vmul.f32 %v993, %v1012
    %v1017 = vmul.f32 %v994, %v1012
    %v1018 = vmul.f32 %v995, %v1012
    %v1019 = vmul.f32 %v996, %v1012
    %v1020 = vmul.f32 %v997, %v1012
    %v1021 = vmul.f32 %v998, %v1012
    %v1022 = vmul.f32 %v999, %v1012
    %v1023 = vmul.f32 %v1000, %v1012
    %v1024 = vmul.f32 %v1001, %v1012
    %v1025 = vmul.f32 %v1002, %v1012
    %v1026 = vmul.f32 %v1003, %v1012
    %v1027 = vmul.f32 %v1004, %v1012
    %v1028 = vmul.f32 %v1005, %v1012
    %v1029 = vmul.f32 %v1006, %v1012
    %v1030 = vld [vmem:[#allocation9 + $0x3] sm:$0x1]
    %v1032 = vlaneseq
    %v1033 = vshrl.u32 %v1032, 7
    %v1034 = vsub.s32 0, %v1033
    %v1035 = vrot.slane %v1030, %v1034
    %v1037 = vadd.f32 %v1014, %v1035
    %v1038 = vadd.f32 %v1015, %v1035
    %v1039 = vadd.f32 %v1016, %v1035
    %v1040 = vadd.f32 %v1017, %v1035
    %v1041 = vadd.f32 %v1018, %v1035
    %v1042 = vadd.f32 %v1019, %v1035
    %v1043 = vadd.f32 %v1020, %v1035
    %v1044 = vadd.f32 %v1021, %v1035
    %v1045 = vadd.f32 %v1022, %v1035
    %v1046 = vadd.f32 %v1023, %v1035
    %v1047 = vadd.f32 %v1024, %v1035
    %v1048 = vadd.f32 %v1025, %v1035
    %v1049 = vadd.f32 %v1026, %v1035
    %v1050 = vadd.f32 %v1027, %v1035
    %v1051 = vadd.f32 %v1028, %v1035
    %v1052 = vadd.f32 %v1029, %v1035
    %v1053 = vld [vmem:[%s2] sm:$0xff]
    %v1054 = vld [vmem:[%s2 + $0x8] sm:$0xff]
    %1055 = vmatprep.subr.mxu0 0.0
    %1056 = vmatpush1.msra.mxu0 %v1037
    %1057 = vmatprep.subr.mxu0 0.0
    %1058 = vmatpush1.msra.mxu0 %v1038
    %1059 = vmatprep.subr.mxu0 0.0
    %1060 = vmatpush1.msra.mxu0 %v1039
    %1061 = vmatprep.subr.mxu0 0.0
    %1062 = vmatpush1.msra.mxu0 %v1040
    %1063 = vmatprep.subr.mxu0 0.0
    %1064 = vmatpush1.msra.mxu0 %v1041
    %1065 = vmatprep.subr.mxu0 0.0
    %1066 = vmatpush1.msra.mxu0 %v1042
    %1067 = vmatprep.subr.mxu0 0.0
    %1068 = vmatpush1.msra.mxu0 %v1043
    %1069 = vmatprep.subr.mxu0 0.0
    %1070 = vmatpush1.msra.mxu0 %v1044
    %1071 = vmatprep.subr.mxu0 0.0
    %1072 = vmatpush1.msra.mxu0 %v1045
    %1073 = vmatprep.subr.mxu0 0.0
    %1074 = vmatpush1.msra.mxu0 %v1046
    %1075 = vmatprep.subr.mxu0 0.0
    %1076 = vmatpush1.msra.mxu0 %v1047
    %1077 = vmatprep.subr.mxu0 0.0
    %1078 = vmatpush1.msra.mxu0 %v1048
    %1079 = vmatprep.subr.mxu0 0.0
    %1080 = vmatpush1.msra.mxu0 %v1049
    %1081 = vmatprep.subr.mxu0 0.0
    %1082 = vmatpush1.msra.mxu0 %v1050
    %1083 = vmatprep.subr.mxu0 0.0
    %1084 = vmatpush1.msra.mxu0 %v1051
    %1085 = vmatprep.subr.mxu0 0.0
    %1086 = vmatpush1.msra.mxu0 %v1052
    %1087 = vmatprep.subr.mxu0 0.0
    %1088 = vmatpush1.msra.mxu0 0.0
    %1089 = vmatprep.subr.mxu0 0.0
    %1090 = vmatpush1.msra.mxu0 0.0
    %1091 = vmatprep.subr.mxu0 0.0
    %1092 = vmatpush1.msra.mxu0 0.0
    %1093 = vmatprep.subr.mxu0 0.0
    %1094 = vmatpush1.msra.mxu0 0.0
    %1095 = vmatprep.subr.mxu0 0.0
    %1096 = vmatpush1.msra.mxu0 0.0
    %1097 = vmatprep.subr.mxu0 0.0
    %1098 = vmatpush1.msra.mxu0 0.0
    %1099 = vmatprep.subr.mxu0 0.0
    %1100 = vmatpush1.msra.mxu0 0.0
    %1101 = vmatprep.subr.mxu0 0.0
    %1102 = vmatpush1.msra.mxu0 0.0
    %1103 = vmatprep.subr.mxu0 0.0
    %1104 = vmatpush1.msra.mxu0 0.0
    %1105 = vmatprep.subr.mxu0 0.0
    %1106 = vmatpush1.msra.mxu0 0.0
    %1107 = vmatprep.subr.mxu0 0.0
    %1108 = vmatpush1.msra.mxu0 0.0
    %1109 = vmatprep.subr.mxu0 0.0
    %1110 = vmatpush1.msra.mxu0 0.0
    %1111 = vmatprep.subr.mxu0 0.0
    %1112 = vmatpush1.msra.mxu0 0.0
    %1113 = vmatprep.subr.mxu0 0.0
    %1114 = vmatpush1.msra.mxu0 0.0
    %1115 = vmatprep.subr.mxu0 0.0
    %1116 = vmatpush1.msra.mxu0 0.0
    %1117 = vmatprep.subr.mxu0 0.0
    %1118 = vmatpush1.msra.mxu0 0.0
    %1119 = vmatprep.mubr.f32.mxu0 0.0
    %1120 = vmatmul.mubr.f32.gmra.mrb[0].mxu0 %v1053
    %v1121 = vpop.f32.mrb[0].mxu0
    %v1122 = vadd.f32 0.0, %v1121
    %v1123 = vpop.f32.mrb[0].mxu0
    %1124 = vmatprep.mubr.f32.mxu0 0.0
    %1125 = vmatmul.mubr.f32.gmra.mrb[0].mxu0 %v1054
    %v1126 = vpop.f32.mrb[0].mxu0
    %v1127 = vadd.f32 0.0, %v1126
    %v1128 = vpop.f32.mrb[0].mxu0
    %1129 = vdwg.mxu0
    %v1130 = vld [vmem:[%s3] sm:$0xff]
    %v1131 = vld [vmem:[%s3 + $0x8] sm:$0xff]
    %v1132 = vld [vmem:[#allocation6] sm:$0xff]
    %v1133 = vld [vmem:[#allocation6 + $0x8] sm:$0xf]
    %v1134 = vld [vmem:[#allocation6 + $0xc] sm:$0xff]
    %v1135 = vld [vmem:[#allocation6 + $0x14] sm:$0xf]
    %v1136 = vld [vmem:[#allocation6 + $0x18] sm:$0xff]
    %v1137 = vld [vmem:[#allocation6 + $0x20] sm:$0xf]
    %v1138 = vld [vmem:[#allocation6 + $0x24] sm:$0xff]
    %v1139 = vld [vmem:[#allocation6 + $0x2c] sm:$0xf]
    %v1140 = vld [vmem:[#allocation6 + $0x30] sm:$0xff]
    %v1141 = vld [vmem:[#allocation6 + $0x38] sm:$0xf]
    %v1142 = vld [vmem:[#allocation6 + $0x3c] sm:$0xff]
    %v1143 = vld [vmem:[#allocation6 + $0x44] sm:$0xf]
    %v1144 = vld [vmem:[#allocation6 + $0x48] sm:$0xff]
    %v1145 = vld [vmem:[#allocation6 + $0x50] sm:$0xf]
    %v1146 = vld [vmem:[#allocation6 + $0x54] sm:$0xff]
    %v1147 = vld [vmem:[#allocation6 + $0x5c] sm:$0xf]
    %v1148 = vpack.c.bf16 %v1131, %v1130
    %v1149 = vld [vmem:[%s9] sm:$0xff]
    %v1150 = vld [vmem:[%s9 + $0x8] sm:$0xf]
    %v1151 = vld [vmem:[%s9 + $0xc] sm:$0xff]
    %v1152 = vld [vmem:[%s9 + $0x14] sm:$0xf]
    %v1153 = vld [vmem:[%s9 + $0x18] sm:$0xff]
    %v1154 = vld [vmem:[%s9 + $0x20] sm:$0xf]
    %v1155 = vld [vmem:[%s9 + $0x24] sm:$0xff]
    %v1156 = vld [vmem:[%s9 + $0x2c] sm:$0xf]
    %v1157 = vld [vmem:[%s9 + $0x30] sm:$0xff]
    %v1158 = vld [vmem:[%s9 + $0x38] sm:$0xf]
    %v1159 = vld [vmem:[%s9 + $0x3c] sm:$0xff]
    %v1160 = vld [vmem:[%s9 + $0x44] sm:$0xf]
    %v1161 = vld [vmem:[%s9 + $0x48] sm:$0xff]
    %v1162 = vld [vmem:[%s9 + $0x50] sm:$0xf]
    %v1163 = vld [vmem:[%s9 + $0x54] sm:$0xff]
    %v1164 = vld [vmem:[%s9 + $0x5c] sm:$0xf]
    %v1165 = vld [vmem:[%s9 + $0x60] sm:$0xff]
    %v1166 = vld [vmem:[%s9 + $0x68] sm:$0xf]
    %v1167 = vld [vmem:[%s9 + $0x6c] sm:$0xff]
    %v1168 = vld [vmem:[%s9 + $0x74] sm:$0xf]
    %v1169 = vld [vmem:[%s9 + $0x78] sm:$0xff]
    %v1170 = vld [vmem:[%s9 + $0x80] sm:$0xf]
    %v1171 = vld [vmem:[%s9 + $0x84] sm:$0xff]
    %v1172 = vld [vmem:[%s9 + $0x8c] sm:$0xf]
    %v1173 = vld [vmem:[%s9 + $0x90] sm:$0xff]
    %v1174 = vld [vmem:[%s9 + $0x98] sm:$0xf]
    %v1175 = vld [vmem:[%s9 + $0x9c] sm:$0xff]
    %v1176 = vld [vmem:[%s9 + $0xa4] sm:$0xf]
    %v1177 = vld [vmem:[%s9 + $0xa8] sm:$0xff]
    %v1178 = vld [vmem:[%s9 + $0xb0] sm:$0xf]
    %v1179 = vld [vmem:[%s9 + $0xb4] sm:$0xff]
    %v1180 = vld [vmem:[%s9 + $0xbc] sm:$0xf]
    %v1181 = vpack.c.bf16 %v1127, %v1122
    %v1214 = vunpack.c.l.b16 %v1149
    %v1215 = vunpack.c.h.b16 %v1149
    %v1216 = vunpack.c.l.b16 %v1150
    %v1217 = vunpack.c.l.b16 %v1151
    %v1218 = vunpack.c.h.b16 %v1151
    %v1219 = vunpack.c.l.b16 %v1152
    %v1220 = vunpack.c.l.b16 %v1153
    %v1221 = vunpack.c.h.b16 %v1153
    %v1222 = vunpack.c.l.b16 %v1154
    %v1223 = vunpack.c.l.b16 %v1155
    %v1224 = vunpack.c.h.b16 %v1155
    %v1225 = vunpack.c.l.b16 %v1156
    %v1226 = vunpack.c.l.b16 %v1157
    %v1227 = vunpack.c.h.b16 %v1157
    %v1228 = vunpack.c.l.b16 %v1158
    %v1229 = vunpack.c.l.b16 %v1159
    %v1230 = vunpack.c.h.b16 %v1159
    %v1231 = vunpack.c.l.b16 %v1160
    %v1232 = vunpack.c.l.b16 %v1161
    %v1233 = vunpack.c.h.b16 %v1161
    %v1234 = vunpack.c.l.b16 %v1162
    %v1235 = vunpack.c.l.b16 %v1163
    %v1236 = vunpack.c.h.b16 %v1163
    %v1237 = vunpack.c.l.b16 %v1164
    %v1238 = vunpack.c.l.b16 %v1165
    %v1239 = vunpack.c.h.b16 %v1165
    %v1240 = vunpack.c.l.b16 %v1166
    %v1241 = vunpack.c.l.b16 %v1167
    %v1242 = vunpack.c.h.b16 %v1167
    %v1243 = vunpack.c.l.b16 %v1168
    %v1244 = vunpack.c.l.b16 %v1169
    %v1245 = vunpack.c.h.b16 %v1169
    %v1246 = vunpack.c.l.b16 %v1170
    %v1247 = vunpack.c.l.b16 %v1171
    %v1248 = vunpack.c.h.b16 %v1171
    %v1249 = vunpack.c.l.b16 %v1172
    %v1250 = vunpack.c.l.b16 %v1173
    %v1251 = vunpack.c.h.b16 %v1173
    %v1252 = vunpack.c.l.b16 %v1174
    %v1253 = vunpack.c.l.b16 %v1175
    %v1254 = vunpack.c.h.b16 %v1175
    %v1255 = vunpack.c.l.b16 %v1176
    %v1256 = vunpack.c.l.b16 %v1177
    %v1257 = vunpack.c.h.b16 %v1177
    %v1258 = vunpack.c.l.b16 %v1178
    %v1259 = vunpack.c.l.b16 %v1179
    %v1260 = vunpack.c.h.b16 %v1179
    %v1261 = vunpack.c.l.b16 %v1180
    %v1262 = vpack.c.b16 %v1217, %v1214
    %v1263 = vpack.c.b16 %v1218, %v1215
    %v1264 = vpack.c.b16 %v1219, %v1216
    %v1265 = vpack.c.b16 %v1223, %v1220
    %v1266 = vpack.c.b16 %v1224, %v1221
    %v1267 = vpack.c.b16 %v1225, %v1222
    %v1268 = vpack.c.b16 %v1229, %v1226
    %v1269 = vpack.c.b16 %v1230, %v1227
    %v1270 = vpack.c.b16 %v1231, %v1228
    %v1271 = vpack.c.b16 %v1235, %v1232
    %v1272 = vpack.c.b16 %v1236, %v1233
    %v1273 = vpack.c.b16 %v1237, %v1234
    %v1274 = vpack.c.b16 %v1241, %v1238
    %v1275 = vpack.c.b16 %v1242, %v1239
    %v1276 = vpack.c.b16 %v1243, %v1240
    %v1277 = vpack.c.b16 %v1247, %v1244
    %v1278 = vpack.c.b16 %v1248, %v1245
    %v1279 = vpack.c.b16 %v1249, %v1246
    %v1280 = vpack.c.b16 %v1253, %v1250
    %v1281 = vpack.c.b16 %v1254, %v1251
    %v1282 = vpack.c.b16 %v1255, %v1252
    %v1283 = vpack.c.b16 %v1259, %v1256
    %v1284 = vpack.c.b16 %v1260, %v1257
    %v1285 = vpack.c.b16 %v1261, %v1258
    %1310 = vmatprep.subr.bf16.mxu0 %v1263
    %1311 = vmatpush1.bf16.msra.mxu0 %v1262
    %1312 = vmatprep.subr.bf16.mxu0 %v1266
    %1313 = vmatpush1.bf16.msra.mxu0 %v1265
    %1314 = vmatprep.subr.bf16.mxu0 %v1269
    %1315 = vmatpush1.bf16.msra.mxu0 %v1268
    %1316 = vmatprep.subr.bf16.mxu0 %v1272
    %1317 = vmatpush1.bf16.msra.mxu0 %v1271
    %1318 = vmatprep.subr.bf16.mxu0 %v1275
    %1319 = vmatpush1.bf16.msra.mxu0 %v1274
    %1320 = vmatprep.subr.bf16.mxu0 %v1278
    %1321 = vmatpush1.bf16.msra.mxu0 %v1277
    %1322 = vmatprep.subr.bf16.mxu0 %v1281
    %1323 = vmatpush1.bf16.msra.mxu0 %v1280
    %1324 = vmatprep.subr.bf16.mxu0 %v1284
    %1325 = vmatpush1.bf16.msra.mxu0 %v1283
    %1326 = vmatprep.subr.bf16.mxu0 0
    %1327 = vmatpush1.bf16.msra.mxu0 0
    %1328 = vmatprep.subr.bf16.mxu0 0
    %1329 = vmatpush1.bf16.msra.mxu0 0
    %1330 = vmatprep.subr.bf16.mxu0 0
    %1331 = vmatpush1.bf16.msra.mxu0 0
    %1332 = vmatprep.subr.bf16.mxu0 0
    %1333 = vmatpush1.bf16.msra.mxu0 0
    %1334 = vmatprep.subr.bf16.mxu0 0
    %1335 = vmatpush1.bf16.msra.mxu0 0
    %1336 = vmatprep.subr.bf16.mxu0 0
    %1337 = vmatpush1.bf16.msra.mxu0 0
    %1338 = vmatprep.subr.bf16.mxu0 0
    %1339 = vmatpush1.bf16.msra.mxu0 0
    %1340 = vmatprep.subr.bf16.mxu0 0
    %1341 = vmatpush1.bf16.msra.mxu0 0
    %1342 = vmatprep.mubr.bf16.mxu0 0
    %1343 = vmatmul.mubr.bf16.gmra.mrb[0].mxu0 %v1181
    %v1344 = vpop.f32.mrb[0].mxu0
    %v1345 = vadd.f32 0.0, %v1344
    %v1346 = vpop.f32.mrb[0].mxu0
    %v1347 = vadd.f32 0.0, %v1346
    %v1348 = vpop.f32.mrb[0].mxu0
    %v1349 = vadd.f32 0.0, %v1348
    %v1350 = vpop.f32.mrb[0].mxu0
    %v1351 = vadd.f32 0.0, %v1350
    %1352 = vdwg.mxu0
    %1353 = vmatprep.subr.bf16.mxu0 0
    %1354 = vmatpush1.bf16.msra.mxu0 %v1264
    %1355 = vmatprep.subr.bf16.mxu0 0
    %1356 = vmatpush1.bf16.msra.mxu0 %v1267
    %1357 = vmatprep.subr.bf16.mxu0 0
    %1358 = vmatpush1.bf16.msra.mxu0 %v1270
    %1359 = vmatprep.subr.bf16.mxu0 0
    %1360 = vmatpush1.bf16.msra.mxu0 %v1273
    %1361 = vmatprep.subr.bf16.mxu0 0
    %1362 = vmatpush1.bf16.msra.mxu0 %v1276
    %1363 = vmatprep.subr.bf16.mxu0 0
    %1364 = vmatpush1.bf16.msra.mxu0 %v1279
    %1365 = vmatprep.subr.bf16.mxu0 0
    %1366 = vmatpush1.bf16.msra.mxu0 %v1282
    %1367 = vmatprep.subr.bf16.mxu0 0
    %1368 = vmatpush1.bf16.msra.mxu0 %v1285
    %1369 = vmatprep.subr.bf16.mxu0 0
    %1370 = vmatpush1.bf16.msra.mxu0 0
    %1371 = vmatprep.subr.bf16.mxu0 0
    %1372 = vmatpush1.bf16.msra.mxu0 0
    %1373 = vmatprep.subr.bf16.mxu0 0
    %1374 = vmatpush1.bf16.msra.mxu0 0
    %1375 = vmatprep.subr.bf16.mxu0 0
    %1376 = vmatpush1.bf16.msra.mxu0 0
    %1377 = vmatprep.subr.bf16.mxu0 0
    %1378 = vmatpush1.bf16.msra.mxu0 0
    %1379 = vmatprep.subr.bf16.mxu0 0
    %1380 = vmatpush1.bf16.msra.mxu0 0
    %1381 = vmatprep.subr.bf16.mxu0 0
    %1382 = vmatpush1.bf16.msra.mxu0 0
    %1383 = vmatprep.subr.bf16.mxu0 0
    %1384 = vmatpush1.bf16.msra.mxu0 0
    %1385 = vmatprep.mubr.bf16.mxu0 0
    %1386 = vmatmul.mubr.bf16.gmra.mrb[0].mxu0 %v1181
    %v1387 = vpop.f32.mrb[0].mxu0
    %v1388 = vadd.f32 0.0, %v1387
    %v1389 = vpop.f32.mrb[0].mxu0
    %v1390 = vpop.f32.mrb[0].mxu0
    %v1391 = vadd.f32 0.0, %v1390
    %v1392 = vpop.f32.mrb[0].mxu0
    %1393 = vdwg.mxu0
    %v1410 = vunpack.c.l.b16 %v1132
    %v1411 = vunpack.c.h.b16 %v1132
    %v1412 = vunpack.c.l.b16 %v1133
    %v1413 = vunpack.c.l.b16 %v1134
    %v1414 = vunpack.c.h.b16 %v1134
    %v1415 = vunpack.c.l.b16 %v1135
    %v1416 = vunpack.c.l.b16 %v1136
    %v1417 = vunpack.c.h.b16 %v1136
    %v1418 = vunpack.c.l.b16 %v1137
    %v1419 = vunpack.c.l.b16 %v1138
    %v1420 = vunpack.c.h.b16 %v1138
    %v1421 = vunpack.c.l.b16 %v1139
    %v1422 = vunpack.c.l.b16 %v1140
    %v1423 = vunpack.c.h.b16 %v1140
    %v1424 = vunpack.c.l.b16 %v1141
    %v1425 = vunpack.c.l.b16 %v1142
    %v1426 = vunpack.c.h.b16 %v1142
    %v1427 = vunpack.c.l.b16 %v1143
    %v1428 = vunpack.c.l.b16 %v1144
    %v1429 = vunpack.c.h.b16 %v1144
    %v1430 = vunpack.c.l.b16 %v1145
    %v1431 = vunpack.c.l.b16 %v1146
    %v1432 = vunpack.c.h.b16 %v1146
    %v1433 = vunpack.c.l.b16 %v1147
    %v1434 = vpack.c.b16 %v1413, %v1410
    %v1435 = vpack.c.b16 %v1414, %v1411
    %v1436 = vpack.c.b16 %v1415, %v1412
    %v1437 = vpack.c.b16 %v1419, %v1416
    %v1438 = vpack.c.b16 %v1420, %v1417
    %v1439 = vpack.c.b16 %v1421, %v1418
    %v1440 = vpack.c.b16 %v1425, %v1422
    %v1441 = vpack.c.b16 %v1426, %v1423
    %v1442 = vpack.c.b16 %v1427, %v1424
    %v1443 = vpack.c.b16 %v1431, %v1428
    %v1444 = vpack.c.b16 %v1432, %v1429
    %v1445 = vpack.c.b16 %v1433, %v1430
    %vm1458 = vcmask 523264
    %v1460 = vsel %vm1458, %v1148, 0
    %1462 = vmatprep.subr.bf16.mxu0 %v1435
    %1463 = vmatpush1.bf16.msra.mxu0 %v1434
    %1464 = vmatprep.subr.bf16.mxu0 %v1438
    %1465 = vmatpush1.bf16.msra.mxu0 %v1437
    %1466 = vmatprep.subr.bf16.mxu0 %v1441
    %1467 = vmatpush1.bf16.msra.mxu0 %v1440
    %1468 = vmatprep.subr.bf16.mxu0 %v1444
    %1469 = vmatpush1.bf16.msra.mxu0 %v1443
    %1470 = vmatprep.subr.bf16.mxu0 0
    %1471 = vmatpush1.bf16.msra.mxu0 0
    %1472 = vmatprep.subr.bf16.mxu0 0
    %1473 = vmatpush1.bf16.msra.mxu0 0
    %1474 = vmatprep.subr.bf16.mxu0 0
    %1475 = vmatpush1.bf16.msra.mxu0 0
    %1476 = vmatprep.subr.bf16.mxu0 0
    %1477 = vmatpush1.bf16.msra.mxu0 0
    %1478 = vmatprep.subr.bf16.mxu0 0
    %1479 = vmatpush1.bf16.msra.mxu0 0
    %1480 = vmatprep.subr.bf16.mxu0 0
    %1481 = vmatpush1.bf16.msra.mxu0 0
    %1482 = vmatprep.subr.bf16.mxu0 0
    %1483 = vmatpush1.bf16.msra.mxu0 0
    %1484 = vmatprep.subr.bf16.mxu0 0
    %1485 = vmatpush1.bf16.msra.mxu0 0
    %1486 = vmatprep.subr.bf16.mxu0 0
    %1487 = vmatpush1.bf16.msra.mxu0 0
    %1488 = vmatprep.subr.bf16.mxu0 0
    %1489 = vmatpush1.bf16.msra.mxu0 0
    %1490 = vmatprep.subr.bf16.mxu0 0
    %1491 = vmatpush1.bf16.msra.mxu0 0
    %1492 = vmatprep.subr.bf16.mxu0 0
    %1493 = vmatpush1.bf16.msra.mxu0 0
    %1494 = vmatprep.mubr.bf16.mxu0 0
    %1495 = vmatmul.mubr.bf16.gmra.mrb[0].mxu0 %v1460
    %v1496 = vpop.f32.mrb[0].mxu0
    %v1497 = vadd.f32 %v1345, %v1496
    %v1498 = vpop.f32.mrb[0].mxu0
    %v1499 = vadd.f32 %v1347, %v1498
    %v1500 = vpop.f32.mrb[0].mxu0
    %v1501 = vadd.f32 %v1349, %v1500
    %v1502 = vpop.f32.mrb[0].mxu0
    %v1503 = vadd.f32 %v1351, %v1502
    %1504 = vdwg.mxu0
    %1505 = vmatprep.subr.bf16.mxu0 0
    %1506 = vmatpush1.bf16.msra.mxu0 %v1436
    %1507 = vmatprep.subr.bf16.mxu0 0
    %1508 = vmatpush1.bf16.msra.mxu0 %v1439
    %1509 = vmatprep.subr.bf16.mxu0 0
    %1510 = vmatpush1.bf16.msra.mxu0 %v1442
    %1511 = vmatprep.subr.bf16.mxu0 0
    %1512 = vmatpush1.bf16.msra.mxu0 %v1445
    %1513 = vmatprep.subr.bf16.mxu0 0
    %1514 = vmatpush1.bf16.msra.mxu0 0
    %1515 = vmatprep.subr.bf16.mxu0 0
    %1516 = vmatpush1.bf16.msra.mxu0 0
    %1517 = vmatprep.subr.bf16.mxu0 0
    %1518 = vmatpush1.bf16.msra.mxu0 0
    %1519 = vmatprep.subr.bf16.mxu0 0
    %1520 = vmatpush1.bf16.msra.mxu0 0
    %1521 = vmatprep.subr.bf16.mxu0 0
    %1522 = vmatpush1.bf16.msra.mxu0 0
    %1523 = vmatprep.subr.bf16.mxu0 0
    %1524 = vmatpush1.bf16.msra.mxu0 0
    %1525 = vmatprep.subr.bf16.mxu0 0
    %1526 = vmatpush1.bf16.msra.mxu0 0
    %1527 = vmatprep.subr.bf16.mxu0 0
    %1528 = vmatpush1.bf16.msra.mxu0 0
    %1529 = vmatprep.subr.bf16.mxu0 0
    %1530 = vmatpush1.bf16.msra.mxu0 0
    %1531 = vmatprep.subr.bf16.mxu0 0
    %1532 = vmatpush1.bf16.msra.mxu0 0
    %1533 = vmatprep.subr.bf16.mxu0 0
    %1534 = vmatpush1.bf16.msra.mxu0 0
    %1535 = vmatprep.subr.bf16.mxu0 0
    %1536 = vmatpush1.bf16.msra.mxu0 0
    %1537 = vmatprep.mubr.bf16.mxu0 0
    %1538 = vmatmul.mubr.bf16.gmra.mrb[0].mxu0 %v1460
    %v1539 = vpop.f32.mrb[0].mxu0
    %v1540 = vadd.f32 %v1388, %v1539
    %v1541 = vpop.f32.mrb[0].mxu0
    %v1542 = vpop.f32.mrb[0].mxu0
    %v1543 = vadd.f32 %v1391, %v1542
    %v1544 = vpop.f32.mrb[0].mxu0
    %1545 = vdwg.mxu0
    %v1546 = vld [vmem:[#allocation9 + $0x4] sm:$0x7]
    %v1548 = vlaneseq
    %v1549 = vshrl.u32 %v1548, 7
    %v1550 = vsub.s32 0, %v1549
    %v1551 = vrot.slane %v1546, %v1550
    %v1552 = vlaneseq
    %v1553 = vshrl.u32 %v1552, 7
    %v1554 = vsub.s32 1, %v1553
    %v1555 = vrot.slane %v1546, %v1554
    %v1556 = vlaneseq
    %v1557 = vshrl.u32 %v1556, 7
    %v1558 = vsub.s32 2, %v1557
    %v1559 = vrot.slane %v1546, %v1558
    %v1563 = vadd.f32 %v1497, %v1551
    %v1564 = vadd.f32 %v1499, %v1555
    %v1565 = vadd.f32 %v1540, %v1559
    %v1566 = vadd.f32 %v1501, %v1551
    %v1567 = vadd.f32 %v1503, %v1555
    %v1568 = vadd.f32 %v1543, %v1559
    %v1569 = vld [vmem:[%s4] sm:$0xff]
    %v1570 = vld [vmem:[%s4 + $0x8] sm:$0xff]
    %v1571 = vld [vmem:[#allocation9 + $0x7] sm:$0x1]
    %v1572 = vld [vmem:[%s10] sm:$0xff]
    %v1573 = vld [vmem:[%s10 + $0x8] sm:$0xf]
    %v1574 = vld [vmem:[%s10 + $0xc] sm:$0xff]
    %v1575 = vld [vmem:[%s10 + $0x14] sm:$0xf]
    %v1576 = vld [vmem:[%s10 + $0x18] sm:$0xff]
    %v1577 = vld [vmem:[%s10 + $0x20] sm:$0xf]
    %v1578 = vld [vmem:[%s10 + $0x24] sm:$0xff]
    %v1579 = vld [vmem:[%s10 + $0x2c] sm:$0xf]
    %v1580 = vld [vmem:[%s10 + $0x30] sm:$0xff]
    %v1581 = vld [vmem:[%s10 + $0x38] sm:$0xf]
    %v1582 = vld [vmem:[%s10 + $0x3c] sm:$0xff]
    %v1583 = vld [vmem:[%s10 + $0x44] sm:$0xf]
    %v1584 = vld [vmem:[%s10 + $0x48] sm:$0xff]
    %v1585 = vld [vmem:[%s10 + $0x50] sm:$0xf]
    %v1586 = vld [vmem:[%s10 + $0x54] sm:$0xff]
    %v1587 = vld [vmem:[%s10 + $0x5c] sm:$0xf]
    %v1588 = vld [vmem:[%s10 + $0x60] sm:$0xff]
    %v1589 = vld [vmem:[%s10 + $0x68] sm:$0xf]
    %v1590 = vld [vmem:[%s10 + $0x6c] sm:$0xff]
    %v1591 = vld [vmem:[%s10 + $0x74] sm:$0xf]
    %v1592 = vld [vmem:[%s10 + $0x78] sm:$0xff]
    %v1593 = vld [vmem:[%s10 + $0x80] sm:$0xf]
    %v1594 = vld [vmem:[%s10 + $0x84] sm:$0xff]
    %v1595 = vld [vmem:[%s10 + $0x8c] sm:$0xf]
    %v1596 = vld [vmem:[%s10 + $0x90] sm:$0xff]
    %v1597 = vld [vmem:[%s10 + $0x98] sm:$0xf]
    %v1598 = vld [vmem:[%s10 + $0x9c] sm:$0xff]
    %v1599 = vld [vmem:[%s10 + $0xa4] sm:$0xf]
    %v1600 = vld [vmem:[%s10 + $0xa8] sm:$0xff]
    %v1601 = vld [vmem:[%s10 + $0xb0] sm:$0xf]
    %v1602 = vld [vmem:[%s10 + $0xb4] sm:$0xff]
    %v1603 = vld [vmem:[%s10 + $0xbc] sm:$0xf]
    %v1604 = vpack.c.bf16 %v1570, %v1569
    %v1637 = vunpack.c.l.b16 %v1572
    %v1638 = vunpack.c.h.b16 %v1572
    %v1639 = vunpack.c.l.b16 %v1573
    %v1640 = vunpack.c.l.b16 %v1574
    %v1641 = vunpack.c.h.b16 %v1574
    %v1642 = vunpack.c.l.b16 %v1575
    %v1643 = vunpack.c.l.b16 %v1576
    %v1644 = vunpack.c.h.b16 %v1576
    %v1645 = vunpack.c.l.b16 %v1577
    %v1646 = vunpack.c.l.b16 %v1578
    %v1647 = vunpack.c.h.b16 %v1578
    %v1648 = vunpack.c.l.b16 %v1579
    %v1649 = vunpack.c.l.b16 %v1580
    %v1650 = vunpack.c.h.b16 %v1580
    %v1651 = vunpack.c.l.b16 %v1581
    %v1652 = vunpack.c.l.b16 %v1582
    %v1653 = vunpack.c.h.b16 %v1582
    %v1654 = vunpack.c.l.b16 %v1583
    %v1655 = vunpack.c.l.b16 %v1584
    %v1656 = vunpack.c.h.b16 %v1584
    %v1657 = vunpack.c.l.b16 %v1585
    %v1658 = vunpack.c.l.b16 %v1586
    %v1659 = vunpack.c.h.b16 %v1586
    %v1660 = vunpack.c.l.b16 %v1587
    %v1661 = vunpack.c.l.b16 %v1588
    %v1662 = vunpack.c.h.b16 %v1588
    %v1663 = vunpack.c.l.b16 %v1589
    %v1664 = vunpack.c.l.b16 %v1590
    %v1665 = vunpack.c.h.b16 %v1590
    %v1666 = vunpack.c.l.b16 %v1591
    %v1667 = vunpack.c.l.b16 %v1592
    %v1668 = vunpack.c.h.b16 %v1592
    %v1669 = vunpack.c.l.b16 %v1593
    %v1670 = vunpack.c.l.b16 %v1594
    %v1671 = vunpack.c.h.b16 %v1594
    %v1672 = vunpack.c.l.b16 %v1595
    %v1673 = vunpack.c.l.b16 %v1596
    %v1674 = vunpack.c.h.b16 %v1596
    %v1675 = vunpack.c.l.b16 %v1597
    %v1676 = vunpack.c.l.b16 %v1598
    %v1677 = vunpack.c.h.b16 %v1598
    %v1678 = vunpack.c.l.b16 %v1599
    %v1679 = vunpack.c.l.b16 %v1600
    %v1680 = vunpack.c.h.b16 %v1600
    %v1681 = vunpack.c.l.b16 %v1601
    %v1682 = vunpack.c.l.b16 %v1602
    %v1683 = vunpack.c.h.b16 %v1602
    %v1684 = vunpack.c.l.b16 %v1603
    %v1685 = vpack.c.b16 %v1640, %v1637
    %v1686 = vpack.c.b16 %v1641, %v1638
    %v1687 = vpack.c.b16 %v1642, %v1639
    %v1688 = vpack.c.b16 %v1646, %v1643
    %v1689 = vpack.c.b16 %v1647, %v1644
    %v1690 = vpack.c.b16 %v1648, %v1645
    %v1691 = vpack.c.b16 %v1652, %v1649
    %v1692 = vpack.c.b16 %v1653, %v1650
    %v1693 = vpack.c.b16 %v1654, %v1651
    %v1694 = vpack.c.b16 %v1658, %v1655
    %v1695 = vpack.c.b16 %v1659, %v1656
    %v1696 = vpack.c.b16 %v1660, %v1657
    %v1697 = vpack.c.b16 %v1664, %v1661
    %v1698 = vpack.c.b16 %v1665, %v1662
    %v1699 = vpack.c.b16 %v1666, %v1663
    %v1700 = vpack.c.b16 %v1670, %v1667
    %v1701 = vpack.c.b16 %v1671, %v1668
    %v1702 = vpack.c.b16 %v1672, %v1669
    %v1703 = vpack.c.b16 %v1676, %v1673
    %v1704 = vpack.c.b16 %v1677, %v1674
    %v1705 = vpack.c.b16 %v1678, %v1675
    %v1706 = vpack.c.b16 %v1682, %v1679
    %v1707 = vpack.c.b16 %v1683, %v1680
    %v1708 = vpack.c.b16 %v1684, %v1681
    %1733 = vmatprep.subr.bf16.mxu0 %v1686
    %1734 = vmatpush1.bf16.msra.mxu0 %v1685
    %1735 = vmatprep.subr.bf16.mxu0 %v1689
    %1736 = vmatpush1.bf16.msra.mxu0 %v1688
    %1737 = vmatprep.subr.bf16.mxu0 %v1692
    %1738 = vmatpush1.bf16.msra.mxu0 %v1691
    %1739 = vmatprep.subr.bf16.mxu0 %v1695
    %1740 = vmatpush1.bf16.msra.mxu0 %v1694
    %1741 = vmatprep.subr.bf16.mxu0 %v1698
    %1742 = vmatpush1.bf16.msra.mxu0 %v1697
    %1743 = vmatprep.subr.bf16.mxu0 %v1701
    %1744 = vmatpush1.bf16.msra.mxu0 %v1700
    %1745 = vmatprep.subr.bf16.mxu0 %v1704
    %1746 = vmatpush1.bf16.msra.mxu0 %v1703
    %1747 = vmatprep.subr.bf16.mxu0 %v1707
    %1748 = vmatpush1.bf16.msra.mxu0 %v1706
    %1749 = vmatprep.subr.bf16.mxu0 0
    %1750 = vmatpush1.bf16.msra.mxu0 0
    %1751 = vmatprep.subr.bf16.mxu0 0
    %1752 = vmatpush1.bf16.msra.mxu0 0
    %1753 = vmatprep.subr.bf16.mxu0 0
    %1754 = vmatpush1.bf16.msra.mxu0 0
    %1755 = vmatprep.subr.bf16.mxu0 0
    %1756 = vmatpush1.bf16.msra.mxu0 0
    %1757 = vmatprep.subr.bf16.mxu0 0
    %1758 = vmatpush1.bf16.msra.mxu0 0
    %1759 = vmatprep.subr.bf16.mxu0 0
    %1760 = vmatpush1.bf16.msra.mxu0 0
    %1761 = vmatprep.subr.bf16.mxu0 0
    %1762 = vmatpush1.bf16.msra.mxu0 0
    %1763 = vmatprep.subr.bf16.mxu0 0
    %1764 = vmatpush1.bf16.msra.mxu0 0
    %1765 = vmatprep.mubr.bf16.mxu0 0
    %1766 = vmatmul.mubr.bf16.gmra.mrb[0].mxu0 %v1604
    %v1767 = vpop.f32.mrb[0].mxu0
    %v1768 = vadd.f32 0.0, %v1767
    %v1769 = vpop.f32.mrb[0].mxu0
    %v1770 = vadd.f32 0.0, %v1769
    %v1771 = vpop.f32.mrb[0].mxu0
    %v1772 = vadd.f32 0.0, %v1771
    %v1773 = vpop.f32.mrb[0].mxu0
    %v1774 = vadd.f32 0.0, %v1773
    %1775 = vdwg.mxu0
    %1776 = vmatprep.subr.bf16.mxu0 0
    %1777 = vmatpush1.bf16.msra.mxu0 %v1687
    %1778 = vmatprep.subr.bf16.mxu0 0
    %1779 = vmatpush1.bf16.msra.mxu0 %v1690
    %1780 = vmatprep.subr.bf16.mxu0 0
    %1781 = vmatpush1.bf16.msra.mxu0 %v1693
    %1782 = vmatprep.subr.bf16.mxu0 0
    %1783 = vmatpush1.bf16.msra.mxu0 %v1696
    %1784 = vmatprep.subr.bf16.mxu0 0
    %1785 = vmatpush1.bf16.msra.mxu0 %v1699
    %1786 = vmatprep.subr.bf16.mxu0 0
    %1787 = vmatpush1.bf16.msra.mxu0 %v1702
    %1788 = vmatprep.subr.bf16.mxu0 0
    %1789 = vmatpush1.bf16.msra.mxu0 %v1705
    %1790 = vmatprep.subr.bf16.mxu0 0
    %1791 = vmatpush1.bf16.msra.mxu0 %v1708
    %1792 = vmatprep.subr.bf16.mxu0 0
    %1793 = vmatpush1.bf16.msra.mxu0 0
    %1794 = vmatprep.subr.bf16.mxu0 0
    %1795 = vmatpush1.bf16.msra.mxu0 0
    %1796 = vmatprep.subr.bf16.mxu0 0
    %1797 = vmatpush1.bf16.msra.mxu0 0
    %1798 = vmatprep.subr.bf16.mxu0 0
    %1799 = vmatpush1.bf16.msra.mxu0 0
    %1800 = vmatprep.subr.bf16.mxu0 0
    %1801 = vmatpush1.bf16.msra.mxu0 0
    %1802 = vmatprep.subr.bf16.mxu0 0
    %1803 = vmatpush1.bf16.msra.mxu0 0
    %1804 = vmatprep.subr.bf16.mxu0 0
    %1805 = vmatpush1.bf16.msra.mxu0 0
    %1806 = vmatprep.subr.bf16.mxu0 0
    %1807 = vmatpush1.bf16.msra.mxu0 0
    %1808 = vmatprep.mubr.bf16.mxu0 0
    %1809 = vmatmul.mubr.bf16.gmra.mrb[0].mxu0 %v1604
    %v1810 = vpop.f32.mrb[0].mxu0
    %v1811 = vadd.f32 0.0, %v1810
    %v1812 = vpop.f32.mrb[0].mxu0
    %v1813 = vpop.f32.mrb[0].mxu0
    %v1814 = vadd.f32 0.0, %v1813
    %v1815 = vpop.f32.mrb[0].mxu0
    %1816 = vdwg.mxu0
    %v1817 = vadd.f32 %v1563, %v1768
    %v1818 = vadd.f32 %v1566, %v1772
    %v1819 = vxor.u32 %v1817, 2147483648
    %v1820 = vxor.u32 %v1818, 2147483648
    %v1821 = vmul.f32 %v1819, 1.442695
    %v1822 = vpow.pop %v1821
    %v1823 = vmul.f32 %v1820, 1.442695
    %v1824 = vpow.pop %v1823
    %v1825 = vadd.f32 %v1822, 1.0
    %v1826 = vadd.f32 %v1824, 1.0
    %v1827 = vrcp.pop %v1825
    %v1828 = vmul.f32 1.0, %v1827
    %v1829 = vrcp.pop %v1826
    %v1830 = vmul.f32 1.0, %v1829
    %v1831 = vadd.f32 %v1564, %v1770
    %v1832 = vadd.f32 %v1567, %v1774
    %v1833 = vxor.u32 %v1831, 2147483648
    %v1834 = vxor.u32 %v1832, 2147483648
    %v1835 = vmul.f32 %v1833, 1.442695
    %v1836 = vpow.pop %v1835
    %v1837 = vmul.f32 %v1834, 1.442695
    %v1838 = vpow.pop %v1837
    %v1839 = vadd.f32 %v1836, 1.0
    %v1840 = vadd.f32 %v1838, 1.0
    %v1841 = vrcp.pop %v1839
    %v1842 = vmul.f32 1.0, %v1841
    %v1843 = vrcp.pop %v1840
    %v1844 = vmul.f32 1.0, %v1843
    %v1846 = vlaneseq
    %v1847 = vshrl.u32 %v1846, 7
    %v1848 = vsub.s32 0, %v1847
    %v1849 = vrot.slane %v1571, %v1848
    %v1851 = vadd.f32 %v1811, %v1849
    %v1852 = vadd.f32 %v1814, %v1849
    %v1853 = vmul.f32 %v1828, %v1851
    %v1854 = vmul.f32 %v1830, %v1852
    %v1855 = vadd.f32 %v1565, %v1853
    %v1856 = vadd.f32 %v1568, %v1854
    %v1857 = vtanh.pop %v1855
    %v1858 = vtanh.pop %v1856
    %v1859 = vsub.f32 1.0, %v1842
    %v1860 = vsub.f32 1.0, %v1844
    %v1861 = vmul.f32 %v1859, %v1857
    %v1862 = vmul.f32 %v1860, %v1858
    %v1863 = vmul.f32 %v1842, %v1569
    %v1864 = vmul.f32 %v1844, %v1570
    %v1865 = vadd.f32 %v1861, %v1863
    %v1866 = vadd.f32 %v1862, %v1864
    %v1867 = vld [vmem:[%s11] sm:$0xff]
    %v1868 = vld [vmem:[%s11 + $0x8] sm:$0xf]
    %v1869 = vld [vmem:[%s11 + $0xc] sm:$0xff]
    %v1870 = vld [vmem:[%s11 + $0x14] sm:$0xf]
    %v1871 = vld [vmem:[%s11 + $0x18] sm:$0xff]
    %v1872 = vld [vmem:[%s11 + $0x20] sm:$0xf]
    %v1873 = vld [vmem:[%s11 + $0x24] sm:$0xff]
    %v1874 = vld [vmem:[%s11 + $0x2c] sm:$0xf]
    %v1875 = vld [vmem:[%s11 + $0x30] sm:$0xff]
    %v1876 = vld [vmem:[%s11 + $0x38] sm:$0xf]
    %v1877 = vld [vmem:[%s11 + $0x3c] sm:$0xff]
    %v1878 = vld [vmem:[%s11 + $0x44] sm:$0xf]
    %v1879 = vld [vmem:[%s11 + $0x48] sm:$0xff]
    %v1880 = vld [vmem:[%s11 + $0x50] sm:$0xf]
    %v1881 = vld [vmem:[%s11 + $0x54] sm:$0xff]
    %v1882 = vld [vmem:[%s11 + $0x5c] sm:$0xf]
    %v1883 = vld [vmem:[%s11 + $0x60] sm:$0xff]
    %v1884 = vld [vmem:[%s11 + $0x68] sm:$0xf]
    %v1885 = vld [vmem:[%s11 + $0x6c] sm:$0xff]
    %v1886 = vld [vmem:[%s11 + $0x74] sm:$0xf]
    %v1887 = vld [vmem:[%s11 + $0x78] sm:$0xff]
    %v1888 = vld [vmem:[%s11 + $0x80] sm:$0xf]
    %v1889 = vld [vmem:[%s11 + $0x84] sm:$0xff]
    %v1890 = vld [vmem:[%s11 + $0x8c] sm:$0xf]
    %v1891 = vld [vmem:[%s11 + $0x90] sm:$0xff]
    %v1892 = vld [vmem:[%s11 + $0x98] sm:$0xf]
    %v1893 = vld [vmem:[%s11 + $0x9c] sm:$0xff]
    %v1894 = vld [vmem:[%s11 + $0xa4] sm:$0xf]
    %v1895 = vld [vmem:[%s11 + $0xa8] sm:$0xff]
    %v1896 = vld [vmem:[%s11 + $0xb0] sm:$0xf]
    %v1897 = vld [vmem:[%s11 + $0xb4] sm:$0xff]
    %v1898 = vld [vmem:[%s11 + $0xbc] sm:$0xf]
    %v1899 = vpack.c.bf16 %v1866, %v1865
    %v1900 = vld [vmem:[#allocation9 + $0x8] sm:$0x7]
    %v1902 = vlaneseq
    %v1903 = vshrl.u32 %v1902, 7
    %v1904 = vsub.s32 0, %v1903
    %v1905 = vrot.slane %v1900, %v1904
    %v1906 = vlaneseq
    %v1907 = vshrl.u32 %v1906, 7
    %v1908 = vsub.s32 1, %v1907
    %v1909 = vrot.slane %v1900, %v1908
    %v1910 = vlaneseq
    %v1911 = vshrl.u32 %v1910, 7
    %v1912 = vsub.s32 2, %v1911
    %v1913 = vrot.slane %v1900, %v1912
    %v1949 = vunpack.c.l.b16 %v1867
    %v1950 = vunpack.c.h.b16 %v1867
    %v1951 = vunpack.c.l.b16 %v1868
    %v1952 = vunpack.c.l.b16 %v1869
    %v1953 = vunpack.c.h.b16 %v1869
    %v1954 = vunpack.c.l.b16 %v1870
    %v1955 = vunpack.c.l.b16 %v1871
    %v1956 = vunpack.c.h.b16 %v1871
    %v1957 = vunpack.c.l.b16 %v1872
    %v1958 = vunpack.c.l.b16 %v1873
    %v1959 = vunpack.c.h.b16 %v1873
    %v1960 = vunpack.c.l.b16 %v1874
    %v1961 = vunpack.c.l.b16 %v1875
    %v1962 = vunpack.c.h.b16 %v1875
    %v1963 = vunpack.c.l.b16 %v1876
    %v1964 = vunpack.c.l.b16 %v1877
    %v1965 = vunpack.c.h.b16 %v1877
    %v1966 = vunpack.c.l.b16 %v1878
    %v1967 = vunpack.c.l.b16 %v1879
    %v1968 = vunpack.c.h.b16 %v1879
    %v1969 = vunpack.c.l.b16 %v1880
    %v1970 = vunpack.c.l.b16 %v1881
    %v1971 = vunpack.c.h.b16 %v1881
    %v1972 = vunpack.c.l.b16 %v1882
    %v1973 = vunpack.c.l.b16 %v1883
    %v1974 = vunpack.c.h.b16 %v1883
    %v1975 = vunpack.c.l.b16 %v1884
    %v1976 = vunpack.c.l.b16 %v1885
    %v1977 = vunpack.c.h.b16 %v1885
    %v1978 = vunpack.c.l.b16 %v1886
    %v1979 = vunpack.c.l.b16 %v1887
    %v1980 = vunpack.c.h.b16 %v1887
    %v1981 = vunpack.c.l.b16 %v1888
    %v1982 = vunpack.c.l.b16 %v1889
    %v1983 = vunpack.c.h.b16 %v1889
    %v1984 = vunpack.c.l.b16 %v1890
    %v1985 = vunpack.c.l.b16 %v1891
    %v1986 = vunpack.c.h.b16 %v1891
    %v1987 = vunpack.c.l.b16 %v1892
    %v1988 = vunpack.c.l.b16 %v1893
    %v1989 = vunpack.c.h.b16 %v1893
    %v1990 = vunpack.c.l.b16 %v1894
    %v1991 = vunpack.c.l.b16 %v1895
    %v1992 = vunpack.c.h.b16 %v1895
    %v1993 = vunpack.c.l.b16 %v1896
    %v1994 = vunpack.c.l.b16 %v1897
    %v1995 = vunpack.c.h.b16 %v1897
    %v1996 = vunpack.c.l.b16 %v1898
    %v1997 = vpack.c.b16 %v1952, %v1949
    %v1998 = vpack.c.b16 %v1953, %v1950
    %v1999 = vpack.c.b16 %v1954, %v1951
    %v2000 = vpack.c.b16 %v1958, %v1955
    %v2001 = vpack.c.b16 %v1959, %v1956
    %v2002 = vpack.c.b16 %v1960, %v1957
    %v2003 = vpack.c.b16 %v1964, %v1961
    %v2004 = vpack.c.b16 %v1965, %v1962
    %v2005 = vpack.c.b16 %v1966, %v1963
    %v2006 = vpack.c.b16 %v1970, %v1967
    %v2007 = vpack.c.b16 %v1971, %v1968
    %v2008 = vpack.c.b16 %v1972, %v1969
    %v2009 = vpack.c.b16 %v1976, %v1973
    %v2010 = vpack.c.b16 %v1977, %v1974
    %v2011 = vpack.c.b16 %v1978, %v1975
    %v2012 = vpack.c.b16 %v1982, %v1979
    %v2013 = vpack.c.b16 %v1983, %v1980
    %v2014 = vpack.c.b16 %v1984, %v1981
    %v2015 = vpack.c.b16 %v1988, %v1985
    %v2016 = vpack.c.b16 %v1989, %v1986
    %v2017 = vpack.c.b16 %v1990, %v1987
    %v2018 = vpack.c.b16 %v1994, %v1991
    %v2019 = vpack.c.b16 %v1995, %v1992
    %v2020 = vpack.c.b16 %v1996, %v1993
    %2045 = vmatprep.subr.bf16.mxu0 %v1998
    %2046 = vmatpush1.bf16.msra.mxu0 %v1997
    %2047 = vmatprep.subr.bf16.mxu0 %v2001
    %2048 = vmatpush1.bf16.msra.mxu0 %v2000
    %2049 = vmatprep.subr.bf16.mxu0 %v2004
    %2050 = vmatpush1.bf16.msra.mxu0 %v2003
    %2051 = vmatprep.subr.bf16.mxu0 %v2007
    %2052 = vmatpush1.bf16.msra.mxu0 %v2006
    %2053 = vmatprep.subr.bf16.mxu0 %v2010
    %2054 = vmatpush1.bf16.msra.mxu0 %v2009
    %2055 = vmatprep.subr.bf16.mxu0 %v2013
    %2056 = vmatpush1.bf16.msra.mxu0 %v2012
    %2057 = vmatprep.subr.bf16.mxu0 %v2016
    %2058 = vmatpush1.bf16.msra.mxu0 %v2015
    %2059 = vmatprep.subr.bf16.mxu0 %v2019
    %2060 = vmatpush1.bf16.msra.mxu0 %v2018
    %2061 = vmatprep.subr.bf16.mxu0 0
    %2062 = vmatpush1.bf16.msra.mxu0 0
    %2063 = vmatprep.subr.bf16.mxu0 0
    %2064 = vmatpush1.bf16.msra.mxu0 0
    %2065 = vmatprep.subr.bf16.mxu0 0
    %2066 = vmatpush1.bf16.msra.mxu0 0
    %2067 = vmatprep.subr.bf16.mxu0 0
    %2068 = vmatpush1.bf16.msra.mxu0 0
    %2069 = vmatprep.subr.bf16.mxu0 0
    %2070 = vmatpush1.bf16.msra.mxu0 0
    %2071 = vmatprep.subr.bf16.mxu0 0
    %2072 = vmatpush1.bf16.msra.mxu0 0
    %2073 = vmatprep.subr.bf16.mxu0 0
    %2074 = vmatpush1.bf16.msra.mxu0 0
    %2075 = vmatprep.subr.bf16.mxu0 0
    %2076 = vmatpush1.bf16.msra.mxu0 0
    %2077 = vmatprep.mubr.bf16.mxu0 0
    %2078 = vmatmul.mubr.bf16.gmra.mrb[0].mxu0 %v1899
    %v2079 = vpop.f32.mrb[0].mxu0
    %v2080 = vadd.f32 %v1905, %v2079
    %v2081 = vpop.f32.mrb[0].mxu0
    %v2082 = vadd.f32 %v1909, %v2081
    %v2083 = vpop.f32.mrb[0].mxu0
    %v2084 = vadd.f32 %v1905, %v2083
    %v2085 = vpop.f32.mrb[0].mxu0
    %v2086 = vadd.f32 %v1909, %v2085
    %2087 = vdwg.mxu0
    %2088 = vmatprep.subr.bf16.mxu0 0
    %2089 = vmatpush1.bf16.msra.mxu0 %v1999
    %2090 = vmatprep.subr.bf16.mxu0 0
    %2091 = vmatpush1.bf16.msra.mxu0 %v2002
    %2092 = vmatprep.subr.bf16.mxu0 0
    %2093 = vmatpush1.bf16.msra.mxu0 %v2005
    %2094 = vmatprep.subr.bf16.mxu0 0
    %2095 = vmatpush1.bf16.msra.mxu0 %v2008
    %2096 = vmatprep.subr.bf16.mxu0 0
    %2097 = vmatpush1.bf16.msra.mxu0 %v2011
    %2098 = vmatprep.subr.bf16.mxu0 0
    %2099 = vmatpush1.bf16.msra.mxu0 %v2014
    %2100 = vmatprep.subr.bf16.mxu0 0
    %2101 = vmatpush1.bf16.msra.mxu0 %v2017
    %2102 = vmatprep.subr.bf16.mxu0 0
    %2103 = vmatpush1.bf16.msra.mxu0 %v2020
    %2104 = vmatprep.subr.bf16.mxu0 0
    %2105 = vmatpush1.bf16.msra.mxu0 0
    %2106 = vmatprep.subr.bf16.mxu0 0
    %2107 = vmatpush1.bf16.msra.mxu0 0
    %2108 = vmatprep.subr.bf16.mxu0 0
    %2109 = vmatpush1.bf16.msra.mxu0 0
    %2110 = vmatprep.subr.bf16.mxu0 0
    %2111 = vmatpush1.bf16.msra.mxu0 0
    %2112 = vmatprep.subr.bf16.mxu0 0
    %2113 = vmatpush1.bf16.msra.mxu0 0
    %2114 = vmatprep.subr.bf16.mxu0 0
    %2115 = vmatpush1.bf16.msra.mxu0 0
    %2116 = vmatprep.subr.bf16.mxu0 0
    %2117 = vmatpush1.bf16.msra.mxu0 0
    %2118 = vmatprep.subr.bf16.mxu0 0
    %2119 = vmatpush1.bf16.msra.mxu0 0
    %2120 = vmatprep.mubr.bf16.mxu0 0
    %2121 = vmatmul.mubr.bf16.gmra.mrb[0].mxu0 %v1899
    %v2122 = vpop.f32.mrb[0].mxu0
    %v2123 = vadd.f32 %v1913, %v2122
    %v2124 = vpop.f32.mrb[0].mxu0
    %v2125 = vpop.f32.mrb[0].mxu0
    %v2126 = vadd.f32 %v1913, %v2125
    %v2127 = vpop.f32.mrb[0].mxu0
    %2128 = vdwg.mxu0
    %v2129 = vld [vmem:[%s5] sm:$0xff]
    %v2130 = vld [vmem:[%s5 + $0x8] sm:$0xff]
    %v2131 = vld [vmem:[#allocation9 + $0xb] sm:$0x1]
    %v2132 = vld [vmem:[%s12] sm:$0xff]
    %v2133 = vld [vmem:[%s12 + $0x8] sm:$0xf]
    %v2134 = vld [vmem:[%s12 + $0xc] sm:$0xff]
    %v2135 = vld [vmem:[%s12 + $0x14] sm:$0xf]
    %v2136 = vld [vmem:[%s12 + $0x18] sm:$0xff]
    %v2137 = vld [vmem:[%s12 + $0x20] sm:$0xf]
    %v2138 = vld [vmem:[%s12 + $0x24] sm:$0xff]
    %v2139 = vld [vmem:[%s12 + $0x2c] sm:$0xf]
    %v2140 = vld [vmem:[%s12 + $0x30] sm:$0xff]
    %v2141 = vld [vmem:[%s12 + $0x38] sm:$0xf]
    %v2142 = vld [vmem:[%s12 + $0x3c] sm:$0xff]
    %v2143 = vld [vmem:[%s12 + $0x44] sm:$0xf]
    %v2144 = vld [vmem:[%s12 + $0x48] sm:$0xff]
    %v2145 = vld [vmem:[%s12 + $0x50] sm:$0xf]
    %v2146 = vld [vmem:[%s12 + $0x54] sm:$0xff]
    %v2147 = vld [vmem:[%s12 + $0x5c] sm:$0xf]
    %v2148 = vld [vmem:[%s12 + $0x60] sm:$0xff]
    %v2149 = vld [vmem:[%s12 + $0x68] sm:$0xf]
    %v2150 = vld [vmem:[%s12 + $0x6c] sm:$0xff]
    %v2151 = vld [vmem:[%s12 + $0x74] sm:$0xf]
    %v2152 = vld [vmem:[%s12 + $0x78] sm:$0xff]
    %v2153 = vld [vmem:[%s12 + $0x80] sm:$0xf]
    %v2154 = vld [vmem:[%s12 + $0x84] sm:$0xff]
    %v2155 = vld [vmem:[%s12 + $0x8c] sm:$0xf]
    %v2156 = vld [vmem:[%s12 + $0x90] sm:$0xff]
    %v2157 = vld [vmem:[%s12 + $0x98] sm:$0xf]
    %v2158 = vld [vmem:[%s12 + $0x9c] sm:$0xff]
    %v2159 = vld [vmem:[%s12 + $0xa4] sm:$0xf]
    %v2160 = vld [vmem:[%s12 + $0xa8] sm:$0xff]
    %v2161 = vld [vmem:[%s12 + $0xb0] sm:$0xf]
    %v2162 = vld [vmem:[%s12 + $0xb4] sm:$0xff]
    %v2163 = vld [vmem:[%s12 + $0xbc] sm:$0xf]
    %v2164 = vpack.c.bf16 %v2130, %v2129
    %v2197 = vunpack.c.l.b16 %v2132
    %v2198 = vunpack.c.h.b16 %v2132
    %v2199 = vunpack.c.l.b16 %v2133
    %v2200 = vunpack.c.l.b16 %v2134
    %v2201 = vunpack.c.h.b16 %v2134
    %v2202 = vunpack.c.l.b16 %v2135
    %v2203 = vunpack.c.l.b16 %v2136
    %v2204 = vunpack.c.h.b16 %v2136
    %v2205 = vunpack.c.l.b16 %v2137
    %v2206 = vunpack.c.l.b16 %v2138
    %v2207 = vunpack.c.h.b16 %v2138
    %v2208 = vunpack.c.l.b16 %v2139
    %v2209 = vunpack.c.l.b16 %v2140
    %v2210 = vunpack.c.h.b16 %v2140
    %v2211 = vunpack.c.l.b16 %v2141
    %v2212 = vunpack.c.l.b16 %v2142
    %v2213 = vunpack.c.h.b16 %v2142
    %v2214 = vunpack.c.l.b16 %v2143
    %v2215 = vunpack.c.l.b16 %v2144
    %v2216 = vunpack.c.h.b16 %v2144
    %v2217 = vunpack.c.l.b16 %v2145
    %v2218 = vunpack.c.l.b16 %v2146
    %v2219 = vunpack.c.h.b16 %v2146
    %v2220 = vunpack.c.l.b16 %v2147
    %v2221 = vunpack.c.l.b16 %v2148
    %v2222 = vunpack.c.h.b16 %v2148
    %v2223 = vunpack.c.l.b16 %v2149
    %v2224 = vunpack.c.l.b16 %v2150
    %v2225 = vunpack.c.h.b16 %v2150
    %v2226 = vunpack.c.l.b16 %v2151
    %v2227 = vunpack.c.l.b16 %v2152
    %v2228 = vunpack.c.h.b16 %v2152
    %v2229 = vunpack.c.l.b16 %v2153
    %v2230 = vunpack.c.l.b16 %v2154
    %v2231 = vunpack.c.h.b16 %v2154
    %v2232 = vunpack.c.l.b16 %v2155
    %v2233 = vunpack.c.l.b16 %v2156
    %v2234 = vunpack.c.h.b16 %v2156
    %v2235 = vunpack.c.l.b16 %v2157
    %v2236 = vunpack.c.l.b16 %v2158
    %v2237 = vunpack.c.h.b16 %v2158
    %v2238 = vunpack.c.l.b16 %v2159
    %v2239 = vunpack.c.l.b16 %v2160
    %v2240 = vunpack.c.h.b16 %v2160
    %v2241 = vunpack.c.l.b16 %v2161
    %v2242 = vunpack.c.l.b16 %v2162
    %v2243 = vunpack.c.h.b16 %v2162
    %v2244 = vunpack.c.l.b16 %v2163
    %v2245 = vpack.c.b16 %v2200, %v2197
    %v2246 = vpack.c.b16 %v2201, %v2198
    %v2247 = vpack.c.b16 %v2202, %v2199
    %v2248 = vpack.c.b16 %v2206, %v2203
    %v2249 = vpack.c.b16 %v2207, %v2204
    %v2250 = vpack.c.b16 %v2208, %v2205
    %v2251 = vpack.c.b16 %v2212, %v2209
    %v2252 = vpack.c.b16 %v2213, %v2210
    %v2253 = vpack.c.b16 %v2214, %v2211
    %v2254 = vpack.c.b16 %v2218, %v2215
    %v2255 = vpack.c.b16 %v2219, %v2216
    %v2256 = vpack.c.b16 %v2220, %v2217
    %v2257 = vpack.c.b16 %v2224, %v2221
    %v2258 = vpack.c.b16 %v2225, %v2222
    %v2259 = vpack.c.b16 %v2226, %v2223
    %v2260 = vpack.c.b16 %v2230, %v2227
    %v2261 = vpack.c.b16 %v2231, %v2228
    %v2262 = vpack.c.b16 %v2232, %v2229
    %v2263 = vpack.c.b16 %v2236, %v2233
    %v2264 = vpack.c.b16 %v2237, %v2234
    %v2265 = vpack.c.b16 %v2238, %v2235
    %v2266 = vpack.c.b16 %v2242, %v2239
    %v2267 = vpack.c.b16 %v2243, %v2240
    %v2268 = vpack.c.b16 %v2244, %v2241
    %2293 = vmatprep.subr.bf16.mxu0 %v2246
    %2294 = vmatpush1.bf16.msra.mxu0 %v2245
    %2295 = vmatprep.subr.bf16.mxu0 %v2249
    %2296 = vmatpush1.bf16.msra.mxu0 %v2248
    %2297 = vmatprep.subr.bf16.mxu0 %v2252
    %2298 = vmatpush1.bf16.msra.mxu0 %v2251
    %2299 = vmatprep.subr.bf16.mxu0 %v2255
    %2300 = vmatpush1.bf16.msra.mxu0 %v2254
    %2301 = vmatprep.subr.bf16.mxu0 %v2258
    %2302 = vmatpush1.bf16.msra.mxu0 %v2257
    %2303 = vmatprep.subr.bf16.mxu0 %v2261
    %2304 = vmatpush1.bf16.msra.mxu0 %v2260
    %2305 = vmatprep.subr.bf16.mxu0 %v2264
    %2306 = vmatpush1.bf16.msra.mxu0 %v2263
    %2307 = vmatprep.subr.bf16.mxu0 %v2267
    %2308 = vmatpush1.bf16.msra.mxu0 %v2266
    %2309 = vmatprep.subr.bf16.mxu0 0
    %2310 = vmatpush1.bf16.msra.mxu0 0
    %2311 = vmatprep.subr.bf16.mxu0 0
    %2312 = vmatpush1.bf16.msra.mxu0 0
    %2313 = vmatprep.subr.bf16.mxu0 0
    %2314 = vmatpush1.bf16.msra.mxu0 0
    %2315 = vmatprep.subr.bf16.mxu0 0
    %2316 = vmatpush1.bf16.msra.mxu0 0
    %2317 = vmatprep.subr.bf16.mxu0 0
    %2318 = vmatpush1.bf16.msra.mxu0 0
    %2319 = vmatprep.subr.bf16.mxu0 0
    %2320 = vmatpush1.bf16.msra.mxu0 0
    %2321 = vmatprep.subr.bf16.mxu0 0
    %2322 = vmatpush1.bf16.msra.mxu0 0
    %2323 = vmatprep.subr.bf16.mxu0 0
    %2324 = vmatpush1.bf16.msra.mxu0 0
    %2325 = vmatprep.mubr.bf16.mxu0 0
    %2326 = vmatmul.mubr.bf16.gmra.mrb[0].mxu0 %v2164
    %v2327 = vpop.f32.mrb[0].mxu0
    %v2328 = vadd.f32 0.0, %v2327
    %v2329 = vpop.f32.mrb[0].mxu0
    %v2330 = vadd.f32 0.0, %v2329
    %v2331 = vpop.f32.mrb[0].mxu0
    %v2332 = vadd.f32 0.0, %v2331
    %v2333 = vpop.f32.mrb[0].mxu0
    %v2334 = vadd.f32 0.0, %v2333
    %2335 = vdwg.mxu0
    %2336 = vmatprep.subr.bf16.mxu0 0
    %2337 = vmatpush1.bf16.msra.mxu0 %v2247
    %2338 = vmatprep.subr.bf16.mxu0 0
    %2339 = vmatpush1.bf16.msra.mxu0 %v2250
    %2340 = vmatprep.subr.bf16.mxu0 0
    %2341 = vmatpush1.bf16.msra.mxu0 %v2253
    %2342 = vmatprep.subr.bf16.mxu0 0
    %2343 = vmatpush1.bf16.msra.mxu0 %v2256
    %2344 = vmatprep.subr.bf16.mxu0 0
    %2345 = vmatpush1.bf16.msra.mxu0 %v2259
    %2346 = vmatprep.subr.bf16.mxu0 0
    %2347 = vmatpush1.bf16.msra.mxu0 %v2262
    %2348 = vmatprep.subr.bf16.mxu0 0
    %2349 = vmatpush1.bf16.msra.mxu0 %v2265
    %2350 = vmatprep.subr.bf16.mxu0 0
    %2351 = vmatpush1.bf16.msra.mxu0 %v2268
    %2352 = vmatprep.subr.bf16.mxu0 0
    %2353 = vmatpush1.bf16.msra.mxu0 0
    %2354 = vmatprep.subr.bf16.mxu0 0
    %2355 = vmatpush1.bf16.msra.mxu0 0
    %2356 = vmatprep.subr.bf16.mxu0 0
    %2357 = vmatpush1.bf16.msra.mxu0 0
    %2358 = vmatprep.subr.bf16.mxu0 0
    %2359 = vmatpush1.bf16.msra.mxu0 0
    %2360 = vmatprep.subr.bf16.mxu0 0
    %2361 = vmatpush1.bf16.msra.mxu0 0
    %2362 = vmatprep.subr.bf16.mxu0 0
    %2363 = vmatpush1.bf16.msra.mxu0 0
    %2364 = vmatprep.subr.bf16.mxu0 0
    %2365 = vmatpush1.bf16.msra.mxu0 0
    %2366 = vmatprep.subr.bf16.mxu0 0
    %2367 = vmatpush1.bf16.msra.mxu0 0
    %2368 = vmatprep.mubr.bf16.mxu0 0
    %2369 = vmatmul.mubr.bf16.gmra.mrb[0].mxu0 %v2164
    %v2370 = vpop.f32.mrb[0].mxu0
    %v2371 = vadd.f32 0.0, %v2370
    %v2372 = vpop.f32.mrb[0].mxu0
    %v2373 = vpop.f32.mrb[0].mxu0
    %v2374 = vadd.f32 0.0, %v2373
    %v2375 = vpop.f32.mrb[0].mxu0
    %2376 = vdwg.mxu0
    %v2377 = vadd.f32 %v2080, %v2328
    %v2378 = vadd.f32 %v2084, %v2332
    %v2379 = vxor.u32 %v2377, 2147483648
    %v2380 = vxor.u32 %v2378, 2147483648
    %v2381 = vmul.f32 %v2379, 1.442695
    %v2382 = vpow.pop %v2381
    %v2383 = vmul.f32 %v2380, 1.442695
    %v2384 = vpow.pop %v2383
    %v2385 = vadd.f32 %v2382, 1.0
    %v2386 = vadd.f32 %v2384, 1.0
    %v2387 = vrcp.pop %v2385
    %v2388 = vmul.f32 1.0, %v2387
    %v2389 = vrcp.pop %v2386
    %v2390 = vmul.f32 1.0, %v2389
    %v2391 = vadd.f32 %v2082, %v2330
    %v2392 = vadd.f32 %v2086, %v2334
    %v2393 = vxor.u32 %v2391, 2147483648
    %v2394 = vxor.u32 %v2392, 2147483648
    %v2395 = vmul.f32 %v2393, 1.442695
    %v2396 = vpow.pop %v2395
    %v2397 = vmul.f32 %v2394, 1.442695
    %v2398 = vpow.pop %v2397
    %v2399 = vadd.f32 %v2396, 1.0
    %v2400 = vadd.f32 %v2398, 1.0
    %v2401 = vrcp.pop %v2399
    %v2402 = vmul.f32 1.0, %v2401
    %v2403 = vrcp.pop %v2400
    %v2404 = vmul.f32 1.0, %v2403
    %v2406 = vlaneseq
    %v2407 = vshrl.u32 %v2406, 7
    %v2408 = vsub.s32 0, %v2407
    %v2409 = vrot.slane %v2131, %v2408
    %v2411 = vadd.f32 %v2371, %v2409
    %v2412 = vadd.f32 %v2374, %v2409
    %v2413 = vmul.f32 %v2388, %v2411
    %v2414 = vmul.f32 %v2390, %v2412
    %v2415 = vadd.f32 %v2123, %v2413
    %v2416 = vadd.f32 %v2126, %v2414
    %v2417 = vtanh.pop %v2415
    %v2418 = vtanh.pop %v2416
    %v2419 = vsub.f32 1.0, %v2402
    %v2420 = vsub.f32 1.0, %v2404
    %v2421 = vmul.f32 %v2419, %v2417
    %v2422 = vmul.f32 %v2420, %v2418
    %v2423 = vmul.f32 %v2402, %v2129
    %v2424 = vmul.f32 %v2404, %v2130
    %v2425 = vadd.f32 %v2421, %v2423
    %v2426 = vadd.f32 %v2422, %v2424
    %2427 = vst [vmem:[%s16] sm:$0xff] %v1865
    %2428 = vst [vmem:[%s16 + $0x8] sm:$0xff] %v1866
    %2429 = vst [vmem:[%s17] sm:$0xff] %v2425
    %2430 = vst [vmem:[%s17 + $0x8] sm:$0xff] %v2426
    %v2431 = vld [vmem:[#allocation7] sm:$0xff]
    %v2432 = vld [vmem:[#allocation7 + $0x8] sm:$0xff]
    %v2433 = vld [vmem:[#allocation7 + $0x10] sm:$0xff]
    %v2434 = vld [vmem:[#allocation7 + $0x18] sm:$0xff]
    %v2435 = vld [vmem:[#allocation7 + $0x20] sm:$0xff]
    %v2436 = vld [vmem:[#allocation7 + $0x28] sm:$0xff]
    %v2437 = vld [vmem:[#allocation7 + $0x30] sm:$0xff]
    %v2438 = vld [vmem:[#allocation7 + $0x38] sm:$0xff]
    %v2439 = vld [vmem:[#allocation7 + $0x40] sm:$0xff]
    %v2440 = vld [vmem:[#allocation7 + $0x48] sm:$0xff]
    %v2441 = vld [vmem:[#allocation7 + $0x50] sm:$0xff]
    %v2442 = vld [vmem:[#allocation7 + $0x58] sm:$0xff]
    %v2443 = vld [vmem:[#allocation7 + $0x60] sm:$0xff]
    %v2444 = vld [vmem:[#allocation7 + $0x68] sm:$0xff]
    %v2445 = vld [vmem:[#allocation7 + $0x70] sm:$0xff]
    %v2446 = vld [vmem:[#allocation7 + $0x78] sm:$0xff]
    %v2447 = vpack.c.bf16 %v2426, %v2425
    %v2448 = vld [vmem:[#allocation9 + $0xc] sm:$0x3]
    %v2450 = vlaneseq
    %v2451 = vshrl.u32 %v2450, 7
    %v2452 = vsub.s32 0, %v2451
    %v2453 = vrot.slane %v2448, %v2452
    %v2454 = vlaneseq
    %v2455 = vshrl.u32 %v2454, 7
    %v2456 = vsub.s32 1, %v2455
    %v2457 = vrot.slane %v2448, %v2456
    %v2476 = vunpack.c.l.b16 %v2431
    %v2477 = vunpack.c.h.b16 %v2431
    %v2478 = vunpack.c.l.b16 %v2432
    %v2479 = vunpack.c.h.b16 %v2432
    %v2480 = vunpack.c.l.b16 %v2433
    %v2481 = vunpack.c.h.b16 %v2433
    %v2482 = vunpack.c.l.b16 %v2434
    %v2483 = vunpack.c.h.b16 %v2434
    %v2484 = vunpack.c.l.b16 %v2435
    %v2485 = vunpack.c.h.b16 %v2435
    %v2486 = vunpack.c.l.b16 %v2436
    %v2487 = vunpack.c.h.b16 %v2436
    %v2488 = vunpack.c.l.b16 %v2437
    %v2489 = vunpack.c.h.b16 %v2437
    %v2490 = vunpack.c.l.b16 %v2438
    %v2491 = vunpack.c.h.b16 %v2438
    %v2492 = vunpack.c.l.b16 %v2439
    %v2493 = vunpack.c.h.b16 %v2439
    %v2494 = vunpack.c.l.b16 %v2440
    %v2495 = vunpack.c.h.b16 %v2440
    %v2496 = vunpack.c.l.b16 %v2441
    %v2497 = vunpack.c.h.b16 %v2441
    %v2498 = vunpack.c.l.b16 %v2442
    %v2499 = vunpack.c.h.b16 %v2442
    %v2500 = vunpack.c.l.b16 %v2443
    %v2501 = vunpack.c.h.b16 %v2443
    %v2502 = vunpack.c.l.b16 %v2444
    %v2503 = vunpack.c.h.b16 %v2444
    %v2504 = vunpack.c.l.b16 %v2445
    %v2505 = vunpack.c.h.b16 %v2445
    %v2506 = vunpack.c.l.b16 %v2446
    %v2507 = vunpack.c.h.b16 %v2446
    %v2508 = vpack.c.b16 %v2478, %v2476
    %v2509 = vpack.c.b16 %v2479, %v2477
    %v2510 = vpack.c.b16 %v2482, %v2480
    %v2511 = vpack.c.b16 %v2483, %v2481
    %v2512 = vpack.c.b16 %v2486, %v2484
    %v2513 = vpack.c.b16 %v2487, %v2485
    %v2514 = vpack.c.b16 %v2490, %v2488
    %v2515 = vpack.c.b16 %v2491, %v2489
    %v2516 = vpack.c.b16 %v2494, %v2492
    %v2517 = vpack.c.b16 %v2495, %v2493
    %v2518 = vpack.c.b16 %v2498, %v2496
    %v2519 = vpack.c.b16 %v2499, %v2497
    %v2520 = vpack.c.b16 %v2502, %v2500
    %v2521 = vpack.c.b16 %v2503, %v2501
    %v2522 = vpack.c.b16 %v2506, %v2504
    %v2523 = vpack.c.b16 %v2507, %v2505
    %2540 = vmatprep.subr.bf16.mxu0 %v2509
    %2541 = vmatpush1.bf16.msra.mxu0 %v2508
    %2542 = vmatprep.subr.bf16.mxu0 %v2511
    %2543 = vmatpush1.bf16.msra.mxu0 %v2510
    %2544 = vmatprep.subr.bf16.mxu0 %v2513
    %2545 = vmatpush1.bf16.msra.mxu0 %v2512
    %2546 = vmatprep.subr.bf16.mxu0 %v2515
    %2547 = vmatpush1.bf16.msra.mxu0 %v2514
    %2548 = vmatprep.subr.bf16.mxu0 %v2517
    %2549 = vmatpush1.bf16.msra.mxu0 %v2516
    %2550 = vmatprep.subr.bf16.mxu0 %v2519
    %2551 = vmatpush1.bf16.msra.mxu0 %v2518
    %2552 = vmatprep.subr.bf16.mxu0 %v2521
    %2553 = vmatpush1.bf16.msra.mxu0 %v2520
    %2554 = vmatprep.subr.bf16.mxu0 %v2523
    %2555 = vmatpush1.bf16.msra.mxu0 %v2522
    %2556 = vmatprep.subr.bf16.mxu0 0
    %2557 = vmatpush1.bf16.msra.mxu0 0
    %2558 = vmatprep.subr.bf16.mxu0 0
    %2559 = vmatpush1.bf16.msra.mxu0 0
    %2560 = vmatprep.subr.bf16.mxu0 0
    %2561 = vmatpush1.bf16.msra.mxu0 0
    %2562 = vmatprep.subr.bf16.mxu0 0
    %2563 = vmatpush1.bf16.msra.mxu0 0
    %2564 = vmatprep.subr.bf16.mxu0 0
    %2565 = vmatpush1.bf16.msra.mxu0 0
    %2566 = vmatprep.subr.bf16.mxu0 0
    %2567 = vmatpush1.bf16.msra.mxu0 0
    %2568 = vmatprep.subr.bf16.mxu0 0
    %2569 = vmatpush1.bf16.msra.mxu0 0
    %2570 = vmatprep.subr.bf16.mxu0 0
    %2571 = vmatpush1.bf16.msra.mxu0 0
    %2572 = vmatprep.mubr.bf16.mxu0 0
    %2573 = vmatmul.mubr.bf16.gmra.mrb[0].mxu0 %v2447
    %v2574 = vpop.f32.mrb[0].mxu0
    %v2575 = vadd.f32 %v2453, %v2574
    %v2576 = vpop.f32.mrb[0].mxu0
    %v2577 = vadd.f32 %v2457, %v2576
    %v2578 = vpop.f32.mrb[0].mxu0
    %v2579 = vadd.f32 %v2453, %v2578
    %v2580 = vpop.f32.mrb[0].mxu0
    %v2581 = vadd.f32 %v2457, %v2580
    %2582 = vdwg.mxu0
    %2583 = vst [vmem:[%s15] sm:$0xff] %v2575
    %2584 = vst [vmem:[%s15 + $0x10] sm:$0xff] %v2579
    %v2585 = vxor.u32 %v2577, 2147483648
    %v2586 = vxor.u32 %v2581, 2147483648
    %v2587 = vmul.f32 %v2585, 1.442695
    %v2588 = vpow.pop %v2587
    %v2589 = vmul.f32 %v2586, 1.442695
    %v2590 = vpow.pop %v2589
    %v2591 = vadd.f32 %v2588, 1.0
    %v2592 = vadd.f32 %v2590, 1.0
    %v2593 = vrcp.pop %v2591
    %v2594 = vmul.f32 1.0, %v2593
    %v2595 = vrcp.pop %v2592
    %v2596 = vmul.f32 1.0, %v2595
    %2597 = vst [vmem:[%s15 + $0x8] sm:$0xff] %v2594
    %2598 = vst [vmem:[%s15 + $0x18] sm:$0xff] %v2596
    // Predicated region
    $region82: #{forward.1} parent=1 // pred_check
      _
    $region83: #{forward.1} parent=1 // pred_check_branch
      %2600 = sbr.rel (0) target = $region85
    $region84: #{forward.1} parent=1 // pred_region
      _
    $region85: #{forward.1} parent=1 // pred_fallthru
      _
    // Predicated region
    $region86: #{forward.1} parent=1 // pred_check
      _
    $region87: #{forward.1} parent=1 // pred_check_branch
      %2602 = sbr.rel (0) target = $region89
    $region88: #{forward.1} parent=1 // pred_region
      _
    $region89: #{forward.1} parent=1 // pred_fallthru
      _
    // Predicated region
    $region90: #{forward.1} parent=1 // pred_check
      _
    $region91: #{forward.1} parent=1 // pred_check_branch
      %2604 = sbr.rel (0) target = $region93
    $region92: #{forward.1} parent=1 // pred_region
      _
    $region93: #{forward.1} parent=1 // pred_fallthru
      _
    // Predicated region
    $region94: #{forward.1} parent=1 // pred_check
      _
    $region95: #{forward.1} parent=1 // pred_check_branch
      %2606 = sbr.rel (0) target = $region97
    $region96: #{forward.1} parent=1 // pred_region
      _
    $region97: #{forward.1} parent=1 // pred_fallthru
      _
    // Predicated region
    $region98: #{forward.1} parent=1 // pred_check
      _
    $region99: #{forward.1} parent=1 // pred_check_branch
      %2608 = sbr.rel (0) target = $region101
    $region100: #{forward.1} parent=1 // pred_region
      _
    $region101: #{forward.1} parent=1 // pred_fallthru
      _
    // Predicated region
    $region102: #{forward.1} parent=1 // pred_check
      _
    $region103: #{forward.1} parent=1 // pred_check_branch
      %2610 = sbr.rel (0) target = $region105
    $region104: #{forward.1} parent=1 // pred_region
      _
    $region105: #{forward.1} parent=1 // pred_fallthru
      _
    %2611 = vsyncpa [#allocation3], 1
    %2612 = vsyncpa [#allocation5], 1
    %2613 = vsyncpa [#allocation8], 1

</llo_original>
